<compile_context>
chip_gen: v5e
topology: v5e:2x2
jax: 0.10.0
libtpu: 0.0.40
codegen_flags: <defaults>
</compile_context>

<pallas_src>
import functools

import jax
import jax.numpy as jnp
from jax import lax
from jax.experimental import pallas as pl
from jax.experimental.pallas import tpu as pltpu


def _round_up(x, m):
    return ((x + m - 1) // m) * m


def bottleneck_kernel(x_ref, w1_ref, w2_ref, w3_ref,
                      b1_ref, b2_ref, b3_ref,
                      o_ref, shift_ref, *, Bt, H, W, Cin, P, Kpad, dilation):
    d = dilation
    M = Bt * H * W

    # ---- conv1 (1x1, BN scale folded into w1) + bias + relu  (bf16 MXU, f32 acc) --------
    x_bf = x_ref[...].astype(jnp.bfloat16).reshape(M, Cin)
    out1 = jnp.dot(x_bf, w1_ref[...], preferred_element_type=jnp.float32)       # (M, P)
    out1_bf = jnp.maximum(out1 + b1_ref[...], 0.0).astype(jnp.bfloat16)         # bf16 now
    out1_hwp = out1_bf.reshape(Bt, H, W, P)

    # ---- stage kx-shifted copies of out1 (fuses the 3 kx taps along K, bf16) ------------
    # shift_ref[b, y + d, x, kx*P + c] = out1[b, y, x + (kx-1)*d, c]   (zero outside image)
    # Channels [3P:Kpad] are padding; their w2k rows are zero, so their values are don't-care.
    zero_col = jnp.zeros((Bt, H, d, P), jnp.bfloat16)
    left = jnp.concatenate([zero_col, out1_hwp[:, :, :W - d, :]], axis=2)        # kx = 0
    right = jnp.concatenate([out1_hwp[:, :, d:, :], zero_col], axis=2)           # kx = 2
    pieces = [left, out1_hwp, right]
    if Kpad > 3 * P:
        pieces.append(jnp.zeros((Bt, H, W, Kpad - 3 * P), jnp.bfloat16))
    slab = jnp.concatenate(pieces, axis=3)                                       # (Bt,H,W,Kpad)

    halo = jnp.zeros((Bt, d, W, Kpad), jnp.bfloat16)
    shift_ref[:, 0:d, :, :] = halo                     # top halo rows
    shift_ref[:, d + H:H + 2 * d, :, :] = halo         # bottom halo rows
    shift_ref[:, d:d + H, :, :] = slab                 # interior: one lane-dense store

    # ---- conv2 (3x3, stride=1, padding=dilation, dilation=d, BN scale folded) -----------
    # 3 matmuls with K = Kpad (128-aligned); each ky slice is a leading-dim slice of the
    # scratch (no (8,128) sublane relayout).  Accumulation chain (no zero init) so the MXU
    # result buffer can accumulate in place on v7x.
    acc = jnp.dot(shift_ref[:, 0:H, :, :].reshape(M, Kpad), w2_ref[0],
                  preferred_element_type=jnp.float32)
    acc = acc + jnp.dot(shift_ref[:, d:d + H, :, :].reshape(M, Kpad), w2_ref[1],
                        preferred_element_type=jnp.float32)
    acc = acc + jnp.dot(shift_ref[:, 2 * d:2 * d + H, :, :].reshape(M, Kpad), w2_ref[2],
                        preferred_element_type=jnp.float32)
    out2_bf = jnp.maximum(acc + b2_ref[...], 0.0).astype(jnp.bfloat16)           # (M, P)

    # ---- conv3 (1x1, BN scale folded) + bias + residual + relu --------------------------
    out3 = jnp.dot(out2_bf, w3_ref[...], preferred_element_type=jnp.float32)     # (M, Cin)
    out3 = out3 + b3_ref[...]
    # Residual is re-read from the (VMEM-resident) input block here instead of being held
    # live in f32 across the whole kernel.
    residual = x_ref[...].astype(jnp.float32).reshape(M, Cin)
    out = jnp.maximum(out3 + residual, 0.0)
    o_ref[...] = out.reshape(Bt, H, W, Cin).astype(o_ref.dtype)


def _vmem_budget_bytes(Bt, H, W, Cin, P, Kpad, d):
    """Derive vmem_limit_bytes from the actual working set instead of a hard-coded cap."""
    in_block = Bt * H * W * Cin * 4
    out_block = Bt * H * W * Cin * 4
    scratch = Bt * (H + 2 * d) * W * Kpad * 2
    weights = (Cin * P + 3 * Kpad * P + P * Cin) * 2 + (2 * P + Cin) * 4
    # live intermediates the compiler may have to spill to scoped VMEM
    live = Bt * H * W * (P * 2 + Kpad * 2 + P * 4 + 2 * Cin * 4)
    need = 2 * (in_block + out_block + weights) + scratch + live + (8 << 20)  # dbl-buf + slack
    return int(min(max(need, 32 << 20), 64 << 20))   # clamp: >= default scoped, <= v7x physical


def bottleneck_forward(x_nhwc, params, *, dilation=1, batch_tile=1):
    B, H, W, Cin = x_nhwc.shape
    P = params["w1"].shape[1]
    Kpad = params["w2k"].shape[1]
    assert Cin == P * 4, "residual add requires inplanes == planes * expansion"
    assert B % batch_tile == 0
    Bt = batch_tile
    d = dilation

    kernel = functools.partial(bottleneck_kernel,
                               Bt=Bt, H=H, W=W, Cin=Cin, P=P, Kpad=Kpad, dilation=dilation)

    return pl.pallas_call(
        kernel,
        out_shape=jax.ShapeDtypeStruct((B, H, W, Cin), x_nhwc.dtype),
        grid_spec=pltpu.PrefetchScalarGridSpec(
            num_scalar_prefetch=0,
            grid=(B // Bt,),
            in_specs=[
                pl.BlockSpec((Bt, H, W, Cin), lambda b: (b, 0, 0, 0)),   # x (f32, residual)
                pl.BlockSpec((Cin, P), lambda b: (0, 0)),                # w1 (bf16, BN folded)
                pl.BlockSpec((3, Kpad, P), lambda b: (0, 0, 0)),         # w2k, K-fused+padded
                pl.BlockSpec((P, Cin), lambda b: (0, 0)),                # w3 (bf16, BN folded)
                pl.BlockSpec((1, P), lambda b: (0, 0)),                  # bias1 (f32)
                pl.BlockSpec((1, P), lambda b: (0, 0)),                  # bias2
                pl.BlockSpec((1, Cin), lambda b: (0, 0)),                # bias3
            ],
            out_specs=pl.BlockSpec((Bt, H, W, Cin), lambda b: (b, 0, 0, 0)),
            scratch_shapes=[
                # bf16 staging buffer for the K-fused 3x3 taps (row-halo padded, 128-lane K).
                pltpu.VMEM((Bt, H + 2 * d, W, Kpad), jnp.bfloat16),
            ],
        ),
        compiler_params=pltpu.CompilerParams(
            dimension_semantics=("parallel",),
            vmem_limit_bytes=_vmem_budget_bytes(Bt, H, W, Cin, P, Kpad, d),
        ),
    )(x_nhwc,
      params["w1"], params["w2k"], params["w3"],
      params["b1"], params["b2"], params["b3"])


# ----------------------------- parameter setup --------------------------------

def fold_bn(gamma, beta, mean, var, eps=1e-5):
    scale = gamma / jnp.sqrt(var + eps)
    bias = beta - mean * scale
    return scale, bias


def make_params(key, inplanes, planes):
    Cin, P = inplanes, planes
    Kpad = _round_up(3 * P, 128)
    ks = jax.random.split(key, 6)
    # conv weights in HWIO
    w1_hwio = 0.1 * jax.random.normal(ks[0], (1, 1, Cin, P), jnp.float32)
    w2_hwio = 0.1 * jax.random.normal(ks[1], (3, 3, P, P), jnp.float32)
    w3_hwio = 0.1 * jax.random.normal(ks[2], (1, 1, P, Cin), jnp.float32)

    def bn_params(k, C):
        k1, k2, k3, k4 = jax.random.split(k, 4)
        gamma = 1.0 + 0.1 * jax.random.normal(k1, (C,), jnp.float32)
        beta = 0.1 * jax.random.normal(k2, (C,), jnp.float32)
        mean = 0.05 * jax.random.normal(k3, (C,), jnp.float32)
        var = 1.0 + 0.1 * jax.random.uniform(k4, (C,), jnp.float32)
        return gamma, beta, mean, var

    g1, be1, m1, v1 = bn_params(ks[3], P)
    g2, be2, m2, v2 = bn_params(ks[4], P)
    g3, be3, m3, v3 = bn_params(ks[5], Cin)
    s1, b1 = fold_bn(g1, be1, m1, v1)
    s2, b2 = fold_bn(g2, be2, m2, v2)
    s3, b3 = fold_bn(g3, be3, m3, v3)

    # Fold BN scales into the conv weight output-channel columns, THEN cast to bf16.
    # The reference uses exactly these folded bf16 weights so rounding matches the kernel.
    w1_f = (w1_hwio * s1[None, None, None, :]).astype(jnp.bfloat16)   # (1,1,Cin,P)
    w2_f = (w2_hwio * s2[None, None, None, :]).astype(jnp.bfloat16)   # (3,3,P,P)
    w3_f = (w3_hwio * s3[None, None, None, :]).astype(jnp.bfloat16)   # (1,1,P,Cin)

    # Kernel-shaped w2: [ky, kx*P + cin, cout], K zero-padded to Kpad (128-aligned lanes).
    w2k = jnp.zeros((3, Kpad, P), jnp.bfloat16).at[:, :3 * P, :].set(
        w2_f.reshape(3, 3 * P, P))

    return dict(
        # folded bf16 HWIO copies for the pure-JAX reference
        w1_hwio_bf=w1_f, w2_hwio_bf=w2_f, w3_hwio_bf=w3_f,
        # bf16, MXU-shaped weights for the kernel (same folded values)
        w1=w1_f.reshape(Cin, P),
        w2k=w2k,
        w3=w3_f.reshape(P, Cin),
        # BN biases stay f32 (scales already folded into the weights)
        b1=b1.reshape(1, P), b2=b2.reshape(1, P), b3=b3.reshape(1, Cin),
    )


# ----------------------------- pure-JAX reference ------------------------------

def bottleneck_ref(x_nhwc, params, *, dilation=1):
    dn = ("NHWC", "HWIO", "NHWC")
    d = dilation

    def bf16(a):  # emulate the kernel's bf16 MXU activation inputs (accumulation stays f32)
        return a.astype(jnp.bfloat16).astype(jnp.float32)

    def f32(a):   # folded weights are already bf16; upcast for the f32 conv reference
        return a.astype(jnp.float32)

    out = lax.conv_general_dilated(bf16(x_nhwc), f32(params["w1_hwio_bf"]), (1, 1), "VALID",
                                   dimension_numbers=dn)
    out = jnp.maximum(out + params["b1"][0], 0.0)
    out = lax.conv_general_dilated(bf16(out), f32(params["w2_hwio_bf"]), (1, 1),
                                   [(d, d), (d, d)], rhs_dilation=(d, d),
                                   dimension_numbers=dn)
    out = jnp.maximum(out + params["b2"][0], 0.0)
    out = lax.conv_general_dilated(bf16(out), f32(params["w3_hwio_bf"]), (1, 1), "VALID",
                                   dimension_numbers=dn)
    out = out + params["b3"][0]
    return jnp.maximum(out + x_nhwc, 0.0)


if __name__ == "__main__":
    # Small shapes consistent with the module: planes=32, inplanes=planes*4=128
    # (downsample=None requires inplanes == planes*expansion and stride=1).
    # Cin=128 keeps the residual/output last dim lane-dense (unmasked stores).
    B, H, W = 2, 16, 16
    planes = 32
    inplanes = planes * 4
    dilation = 2   # DeepLab-style dilated 3x3

    key = jax.random.PRNGKey(0)
    kx_, kp = jax.random.split(key)
    # PyTorch x would be NCHW (B, 128, 16, 16); kernel layout is NHWC.
    x = jax.random.normal(kx_, (B, H, W, inplanes), jnp.float32)
    params = make_params(kp, inplanes, planes)

    ref = bottleneck_ref(x, params, dilation=dilation)

    # batch_tile=1 (default): grid=(2,), even and >= 2 so v7x's two TensorCores both work.
    # batch_tile=2: one fat grid step (better on single-TC v5e/v6e); checked for correctness.
    for bt in (1, 2):
        out = bottleneck_forward(x, params, dilation=dilation, batch_tile=bt)
        out = jax.block_until_ready(out)
        assert out.shape == (B, H, W, inplanes)
        assert jnp.allclose(out, ref, atol=1e-3, rtol=1e-3), \
            f"mismatch vs. reference (batch_tile={bt})"

    print("KERNEL_OK")
</pallas_src>

<mosaic_0001>
module attributes {stable_mosaic.version = 11 : i64} {
  func.func @bottleneck_kernel(%arg0: i32, %arg1: memref<1x16x16x128xf32, #tpu.memory_space<vmem>>, %arg2: memref<128x32xbf16, #tpu.memory_space<vmem>>, %arg3: memref<3x128x32xbf16, #tpu.memory_space<vmem>>, %arg4: memref<32x128xbf16, #tpu.memory_space<vmem>>, %arg5: memref<1x32xf32, #tpu.memory_space<vmem>>, %arg6: memref<1x32xf32, #tpu.memory_space<vmem>>, %arg7: memref<1x128xf32, #tpu.memory_space<vmem>>, %arg8: memref<1x16x16x128xf32, #tpu.memory_space<vmem>>, %arg9: memref<1x20x16x128xbf16, #tpu.memory_space<vmem>>) attributes {dimension_semantics = [#tpu.dimension_semantics<parallel>], iteration_bounds = array<i64: 2>, scalar_prefetch = 0 : i64, scratch_operands = 1 : i64, tpu.core_type = #tpu.core_type<tc>, window_params = [{transform_indices = @transform_0, window_bounds = array<i64: 1, 16, 16, 128>}, {pipeline_mode = #tpu.pipeline_mode<synchronous>, transform_indices = @transform_1, window_bounds = array<i64: 128, 32>}, {pipeline_mode = #tpu.pipeline_mode<synchronous>, transform_indices = @transform_2, window_bounds = array<i64: 3, 128, 32>}, {pipeline_mode = #tpu.pipeline_mode<synchronous>, transform_indices = @transform_3, window_bounds = array<i64: 32, 128>}, {pipeline_mode = #tpu.pipeline_mode<synchronous>, transform_indices = @transform_4, window_bounds = array<i64: 1, 32>}, {pipeline_mode = #tpu.pipeline_mode<synchronous>, transform_indices = @transform_5, window_bounds = array<i64: 1, 32>}, {pipeline_mode = #tpu.pipeline_mode<synchronous>, transform_indices = @transform_6, window_bounds = array<i64: 1, 128>}, {transform_indices = @transform_7, window_bounds = array<i64: 1, 16, 16, 128>}]} {
    %c0 = arith.constant 0 : index
    %c0_0 = arith.constant 0 : index
    %c0_1 = arith.constant 0 : index
    %c0_2 = arith.constant 0 : index
    %0 = vector.load %arg1[%c0, %c0_0, %c0_1, %c0_2] : memref<1x16x16x128xf32, #tpu.memory_space<vmem>>, vector<1x16x16x128xf32>
    %1 = arith.truncf %0 : vector<1x16x16x128xf32> to vector<1x16x16x128xbf16>
    %2 = vector.shape_cast %1 : vector<1x16x16x128xbf16> to vector<256x128xbf16>
    %c0_3 = arith.constant 0 : index
    %c0_4 = arith.constant 0 : index
    %3 = vector.load %arg2[%c0_3, %c0_4] : memref<128x32xbf16, #tpu.memory_space<vmem>>, vector<128x32xbf16>
    %cst = arith.constant dense<0.000000e+00> : vector<256x32xf32>
    %4 = tpu.matmul %2, %3, %cst {dimension_numbers = #tpu.dot_dimension_numbers<[1], [0], [0], [1], [0, 0, 1, 1], [], []>} : vector<256x128xbf16>, vector<128x32xbf16>, vector<256x32xf32> -> vector<256x32xf32>
    %c0_5 = arith.constant 0 : index
    %c0_6 = arith.constant 0 : index
    %5 = vector.load %arg5[%c0_5, %c0_6] : memref<1x32xf32, #tpu.memory_space<vmem>>, vector<1x32xf32>
    %6 = vector.broadcast %5 : vector<1x32xf32> to vector<256x32xf32>
    %7 = arith.addf %4, %6 : vector<256x32xf32>
    %cst_7 = arith.constant 0.000000e+00 : f32
    %8 = vector.broadcast %cst_7 : f32 to vector<256x32xf32>
    %9 = arith.maximumf %7, %8 : vector<256x32xf32>
    %10 = arith.truncf %9 : vector<256x32xf32> to vector<256x32xbf16>
    %11 = vector.shape_cast %10 : vector<256x32xbf16> to vector<1x16x16x32xbf16>
    %cst_8 = arith.constant 0.000000e+00 : bf16
    %12 = vector.broadcast %cst_8 : bf16 to vector<1x16x2x32xbf16>
    %13 = vector.extract_strided_slice %11 {offsets = [0, 0, 0, 0], sizes = [1, 16, 14, 32], strides = [1, 1, 1, 1]} : vector<1x16x16x32xbf16> to vector<1x16x14x32xbf16>
    %14 = tpu.concatenate %12, %13 in 2 : vector<1x16x2x32xbf16>, vector<1x16x14x32xbf16> -> vector<1x16x16x32xbf16>
    %15 = vector.extract_strided_slice %11 {offsets = [0, 0, 2, 0], sizes = [1, 16, 14, 32], strides = [1, 1, 1, 1]} : vector<1x16x16x32xbf16> to vector<1x16x14x32xbf16>
    %16 = tpu.concatenate %15, %12 in 2 : vector<1x16x14x32xbf16>, vector<1x16x2x32xbf16> -> vector<1x16x16x32xbf16>
    %cst_9 = arith.constant 0.000000e+00 : bf16
    %17 = vector.broadcast %cst_9 : bf16 to vector<1x16x16x32xbf16>
    %18 = tpu.concatenate %14, %11, %16, %17 in 3 : vector<1x16x16x32xbf16>, vector<1x16x16x32xbf16>, vector<1x16x16x32xbf16>, vector<1x16x16x32xbf16> -> vector<1x16x16x128xbf16>
    %cst_10 = arith.constant 0.000000e+00 : bf16
    %19 = vector.broadcast %cst_10 : bf16 to vector<1x2x16x128xbf16>
    %c0_11 = arith.constant 0 : index
    %c0_12 = arith.constant 0 : index
    %c0_13 = arith.constant 0 : index
    %c0_14 = arith.constant 0 : index
    %20 = vector.load %arg9[%c0_11, %c0_12, %c0_13, %c0_14] : memref<1x20x16x128xbf16, #tpu.memory_space<vmem>>, vector<1x2x16x128xbf16>
    tpu.vector_store %arg9[%c0_11, %c0_12, %c0_13, %c0_14], %19 {strides = array<i32>} : memref<1x20x16x128xbf16, #tpu.memory_space<vmem>>, vector<1x2x16x128xbf16>,
    %c0_15 = arith.constant 0 : index
    %c18 = arith.constant 18 : index
    %c0_16 = arith.constant 0 : index
    %c0_17 = arith.constant 0 : index
    %21 = vector.load %arg9[%c0_15, %c18, %c0_16, %c0_17] : memref<1x20x16x128xbf16, #tpu.memory_space<vmem>>, vector<1x2x16x128xbf16>
    tpu.vector_store %arg9[%c0_15, %c18, %c0_16, %c0_17], %19 {strides = array<i32>} : memref<1x20x16x128xbf16, #tpu.memory_space<vmem>>, vector<1x2x16x128xbf16>,
    %c0_18 = arith.constant 0 : index
    %c2 = arith.constant 2 : index
    %c0_19 = arith.constant 0 : index
    %c0_20 = arith.constant 0 : index
    %22 = vector.load %arg9[%c0_18, %c2, %c0_19, %c0_20] : memref<1x20x16x128xbf16, #tpu.memory_space<vmem>>, vector<1x16x16x128xbf16>
    tpu.vector_store %arg9[%c0_18, %c2, %c0_19, %c0_20], %18 {strides = array<i32>} : memref<1x20x16x128xbf16, #tpu.memory_space<vmem>>, vector<1x16x16x128xbf16>,
    %c0_21 = arith.constant 0 : index
    %c0_22 = arith.constant 0 : index
    %c0_23 = arith.constant 0 : index
    %c0_24 = arith.constant 0 : index
    %23 = vector.load %arg9[%c0_21, %c0_22, %c0_23, %c0_24] : memref<1x20x16x128xbf16, #tpu.memory_space<vmem>>, vector<1x16x16x128xbf16>
    %24 = vector.shape_cast %23 : vector<1x16x16x128xbf16> to vector<256x128xbf16>
    %c0_25 = arith.constant 0 : index
    %c0_26 = arith.constant 0 : index
    %c0_27 = arith.constant 0 : index
    %25 = vector.load %arg3[%c0_25, %c0_26, %c0_27] : memref<3x128x32xbf16, #tpu.memory_space<vmem>>, vector<1x128x32xbf16>
    %26 = vector.shape_cast %25 : vector<1x128x32xbf16> to vector<128x32xbf16>
    %cst_28 = arith.constant dense<0.000000e+00> : vector<256x32xf32>
    %27 = tpu.matmul %24, %26, %cst_28 {dimension_numbers = #tpu.dot_dimension_numbers<[1], [0], [0], [1], [0, 0, 1, 1], [], []>} : vector<256x128xbf16>, vector<128x32xbf16>, vector<256x32xf32> -> vector<256x32xf32>
    %c0_29 = arith.constant 0 : index
    %c2_30 = arith.constant 2 : index
    %c0_31 = arith.constant 0 : index
    %c0_32 = arith.constant 0 : index
    %28 = vector.load %arg9[%c0_29, %c2_30, %c0_31, %c0_32] : memref<1x20x16x128xbf16, #tpu.memory_space<vmem>>, vector<1x16x16x128xbf16>
    %29 = vector.shape_cast %28 : vector<1x16x16x128xbf16> to vector<256x128xbf16>
    %c1 = arith.constant 1 : index
    %c0_33 = arith.constant 0 : index
    %c0_34 = arith.constant 0 : index
    %30 = vector.load %arg3[%c1, %c0_33, %c0_34] : memref<3x128x32xbf16, #tpu.memory_space<vmem>>, vector<1x128x32xbf16>
    %31 = vector.shape_cast %30 : vector<1x128x32xbf16> to vector<128x32xbf16>
    %cst_35 = arith.constant dense<0.000000e+00> : vector<256x32xf32>
    %32 = tpu.matmul %29, %31, %cst_35 {dimension_numbers = #tpu.dot_dimension_numbers<[1], [0], [0], [1], [0, 0, 1, 1], [], []>} : vector<256x128xbf16>, vector<128x32xbf16>, vector<256x32xf32> -> vector<256x32xf32>
    %33 = arith.addf %27, %32 : vector<256x32xf32>
    %c0_36 = arith.constant 0 : index
    %c4 = arith.constant 4 : index
    %c0_37 = arith.constant 0 : index
    %c0_38 = arith.constant 0 : index
    %34 = vector.load %arg9[%c0_36, %c4, %c0_37, %c0_38] : memref<1x20x16x128xbf16, #tpu.memory_space<vmem>>, vector<1x16x16x128xbf16>
    %35 = vector.shape_cast %34 : vector<1x16x16x128xbf16> to vector<256x128xbf16>
    %c2_39 = arith.constant 2 : index
    %c0_40 = arith.constant 0 : index
    %c0_41 = arith.constant 0 : index
    %36 = vector.load %arg3[%c2_39, %c0_40, %c0_41] : memref<3x128x32xbf16, #tpu.memory_space<vmem>>, vector<1x128x32xbf16>
    %37 = vector.shape_cast %36 : vector<1x128x32xbf16> to vector<128x32xbf16>
    %cst_42 = arith.constant dense<0.000000e+00> : vector<256x32xf32>
    %38 = tpu.matmul %35, %37, %cst_42 {dimension_numbers = #tpu.dot_dimension_numbers<[1], [0], [0], [1], [0, 0, 1, 1], [], []>} : vector<256x128xbf16>, vector<128x32xbf16>, vector<256x32xf32> -> vector<256x32xf32>
    %39 = arith.addf %33, %38 : vector<256x32xf32>
    %c0_43 = arith.constant 0 : index
    %c0_44 = arith.constant 0 : index
    %40 = vector.load %arg6[%c0_43, %c0_44] : memref<1x32xf32, #tpu.memory_space<vmem>>, vector<1x32xf32>
    %41 = vector.broadcast %40 : vector<1x32xf32> to vector<256x32xf32>
    %42 = arith.addf %39, %41 : vector<256x32xf32>
    %cst_45 = arith.constant 0.000000e+00 : f32
    %43 = vector.broadcast %cst_45 : f32 to vector<256x32xf32>
    %44 = arith.maximumf %42, %43 : vector<256x32xf32>
    %45 = arith.truncf %44 : vector<256x32xf32> to vector<256x32xbf16>
    %c0_46 = arith.constant 0 : index
    %c0_47 = arith.constant 0 : index
    %46 = vector.load %arg4[%c0_46, %c0_47] : memref<32x128xbf16, #tpu.memory_space<vmem>>, vector<32x128xbf16>
    %cst_48 = arith.constant dense<0.000000e+00> : vector<256x128xf32>
    %47 = tpu.matmul %45, %46, %cst_48 {dimension_numbers = #tpu.dot_dimension_numbers<[1], [0], [0], [1], [0, 0, 1, 1], [], []>} : vector<256x32xbf16>, vector<32x128xbf16>, vector<256x128xf32> -> vector<256x128xf32>
    %c0_49 = arith.constant 0 : index
    %c0_50 = arith.constant 0 : index
    %48 = vector.load %arg7[%c0_49, %c0_50] : memref<1x128xf32, #tpu.memory_space<vmem>>, vector<1x128xf32>
    %49 = vector.broadcast %48 : vector<1x128xf32> to vector<256x128xf32>
    %50 = arith.addf %47, %49 : vector<256x128xf32>
    %c0_51 = arith.constant 0 : index
    %c0_52 = arith.constant 0 : index
    %c0_53 = arith.constant 0 : index
    %c0_54 = arith.constant 0 : index
    %51 = vector.load %arg1[%c0_51, %c0_52, %c0_53, %c0_54] : memref<1x16x16x128xf32, #tpu.memory_space<vmem>>, vector<1x16x16x128xf32>
    %52 = vector.shape_cast %51 : vector<1x16x16x128xf32> to vector<256x128xf32>
    %53 = arith.addf %50, %52 : vector<256x128xf32>
    %cst_55 = arith.constant 0.000000e+00 : f32
    %54 = vector.broadcast %cst_55 : f32 to vector<256x128xf32>
    %55 = arith.maximumf %53, %54 : vector<256x128xf32>
    %56 = vector.shape_cast %55 : vector<256x128xf32> to vector<1x16x16x128xf32>
    %c0_56 = arith.constant 0 : index
    %c0_57 = arith.constant 0 : index
    %c0_58 = arith.constant 0 : index
    %c0_59 = arith.constant 0 : index
    %57 = vector.load %arg8[%c0_56, %c0_57, %c0_58, %c0_59] : memref<1x16x16x128xf32, #tpu.memory_space<vmem>>, vector<1x16x16x128xf32>
    tpu.vector_store %arg8[%c0_56, %c0_57, %c0_58, %c0_59], %56 {strides = array<i32>} : memref<1x16x16x128xf32, #tpu.memory_space<vmem>>, vector<1x16x16x128xf32>,
    return
  }
  func.func @transform_0(%arg0: i32) -> (i32, i32, i32, i32) {
    %c0_i32 = arith.constant 0 : i32
    %c0_i32_0 = arith.constant 0 : i32
    %c0_i32_1 = arith.constant 0 : i32
    %c0_i32_2 = arith.constant 0 : i32
    return %arg0, %c0_i32, %c0_i32_0, %c0_i32_1 : i32, i32, i32, i32
  }
  func.func @transform_1(%arg0: i32) -> (i32, i32) {
    %c0_i32 = arith.constant 0 : i32
    %c0_i32_0 = arith.constant 0 : i32
    %c0_i32_1 = arith.constant 0 : i32
    return %c0_i32, %c0_i32_0 : i32, i32
  }
  func.func @transform_2(%arg0: i32) -> (i32, i32, i32) {
    %c0_i32 = arith.constant 0 : i32
    %c0_i32_0 = arith.constant 0 : i32
    %c0_i32_1 = arith.constant 0 : i32
    %c0_i32_2 = arith.constant 0 : i32
    return %c0_i32, %c0_i32_0, %c0_i32_1 : i32, i32, i32
  }
  func.func @transform_3(%arg0: i32) -> (i32, i32) {
    %c0_i32 = arith.constant 0 : i32
    %c0_i32_0 = arith.constant 0 : i32
    %c0_i32_1 = arith.constant 0 : i32
    return %c0_i32, %c0_i32_0 : i32, i32
  }
  func.func @transform_4(%arg0: i32) -> (i32, i32) {
    %c0_i32 = arith.constant 0 : i32
    %c0_i32_0 = arith.constant 0 : i32
    %c0_i32_1 = arith.constant 0 : i32
    return %c0_i32, %c0_i32_0 : i32, i32
  }
  func.func @transform_5(%arg0: i32) -> (i32, i32) {
    %c0_i32 = arith.constant 0 : i32
    %c0_i32_0 = arith.constant 0 : i32
    %c0_i32_1 = arith.constant 0 : i32
    return %c0_i32, %c0_i32_0 : i32, i32
  }
  func.func @transform_6(%arg0: i32) -> (i32, i32) {
    %c0_i32 = arith.constant 0 : i32
    %c0_i32_0 = arith.constant 0 : i32
    %c0_i32_1 = arith.constant 0 : i32
    return %c0_i32, %c0_i32_0 : i32, i32
  }
  func.func @transform_7(%arg0: i32) -> (i32, i32, i32, i32) {
    %c0_i32 = arith.constant 0 : i32
    %c0_i32_0 = arith.constant 0 : i32
    %c0_i32_1 = arith.constant 0 : i32
    %c0_i32_2 = arith.constant 0 : i32
    return %arg0, %c0_i32, %c0_i32_0, %c0_i32_1 : i32, i32, i32, i32
  }
}

</mosaic_0001>

<llo_original>
// kernel: tpu_custom_call.1
$region0: #{tpu_custom_call.1}
  #allocation0 [shape = 'u32[]', space=smem, size = 0x4, offset = 0x4, fixed_abs, tag = 'smem constant byte address 0x4 - core index']
  #allocation1 [shape = 'u32[72,128]{1,0:T(1,128)}', space=vmem, size = 0x9000, scoped, tag = 'internal scratch']
  #allocation2 [shape = 'bf16[1,20,16,128]{3,2,1,0:T(8,128)(2,1)}', space=vmem, size = 0x14000, scoped, tag = 'scratch operand']
  %s0 = inlined_call_operand.hbm [shape: f32[2,16,16,128], index: 0, kind: input, shape index: {}]
  %s1 = inlined_call_operand.vmem [shape: bf16[128,32], index: 1, kind: input, shape index: {}]
  %s2 = inlined_call_operand.vmem [shape: bf16[3,128,32], index: 2, kind: input, shape index: {}]
  %s3 = inlined_call_operand.vmem [shape: bf16[32,128], index: 3, kind: input, shape index: {}]
  %s4 = inlined_call_operand.vmem [shape: f32[1,32], index: 4, kind: input, shape index: {}]
  %s5 = inlined_call_operand.vmem [shape: f32[1,32], index: 5, kind: input, shape index: {}]
  %s6 = inlined_call_operand.vmem [shape: f32[1,128], index: 6, kind: input, shape index: {}]
  %s7 = inlined_call_operand.hbm [shape: f32[2,16,16,128], index: 7, kind: output, shape index: {}]
  %s8 = sld [smem:[#allocation0]]
  $region65: #{tpu_custom_call.1} parent=0
    _
  %s10 = ssub.s32 1, %s8
  %s11 = scalar_select 0, %s10, %s8
  $region1: #{tpu_custom_call.1} parent=0
    #allocation3 [shape = 'u8[262144]{0}', space=vmem, size = 0x40000, scoped, tag = 'input window, operand 0']
    #allocation4 [shape = 's32[2]{0}', space=sflag, size = 0x8, scoped, tag = 'scoped memory for tpu_custom_call.1']
    #allocation5 [shape = 's32[2]{0}', space=sflag, size = 0x8, scoped, tag = 'scoped memory for tpu_custom_call.1']
    #allocation6 [shape = 'u8[262144]{0}', space=vmem, size = 0x40000, scoped, tag = 'output window, operand 0']
    %12 = vsyncpa [#allocation4], 0
    %s13 = scalar_lea.sflag [#allocation4], 1
    %14 = vsyncpa %s13, 0
    %15 = vsyncpa [#allocation5], 0
    %s16 = scalar_lea.sflag [#allocation5], 1
    %17 = vsyncpa %s16, 0
    loop: start=0, step=1, limit=4
    $region2: #{tpu_custom_call.1} parent=1 // loop_pre_header
      _
    $region3: #{tpu_custom_call.1} parent=1 // loop_header
      %s19 = sphi 0, %s23
      %p20 = scmp.ge.s32.totalorder %s19, 4
      %s29 = sphi 0, %s31
      %s32 = sphi 0, %s29
      %s33 = sphi 0, %s32
      %s49 = sphi 0, %s33
      %s53 = sphi 0, %s53
      %s55 = sphi 0, %s53
      %s56 = sphi 0, %s55
      %s70 = sphi 0, %s56
      %s74 = sphi 0, %s74
      %s76 = sphi 0, %s74
      %s77 = sphi 0, %s76
      %s91 = sphi 0, %s77
      %s95 = sphi 0, %s95
      %s97 = sphi 0, %s95
      %s98 = sphi 0, %s97
      %s112 = sphi 0, %s98
      %s116 = sphi 0, %s116
      %s118 = sphi 0, %s116
      %s119 = sphi 0, %s118
      %s133 = sphi 0, %s119
      %s137 = sphi 0, %s137
      %s139 = sphi 0, %s137
      %s140 = sphi 0, %s139
      %s154 = sphi 0, %s140
      %s158 = sphi 0, %s158
      %s160 = sphi 0, %s158
      %s161 = sphi 0, %s160
      %s175 = sphi 0, %s161
      %s181 = sphi 0, %s183
      %s184 = sphi 0, %s181
      %s185 = sphi 0, %s184
      %s201 = sphi 0, %s185
    $region4: #{tpu_custom_call.1} parent=1 // loop_header_branch
      %22 = sbr.rel (%p20) target = $region8
    $region5: #{tpu_custom_call.1} parent=1 // loop_body
      %s24 = ssub.s32 %s19, 1
      %s25 = ssub.s32 %s19, 2
      %s26 = sadd.s32 %s19, 1
      %s27 = ssub.s32 %s19, %s26
      %p28 = scmp.eq.s32.totalorder %s27, 0
      %s30 = sadd.s32 %s29, 1
      %s31 = scalar_select %p28, %s29, %s30
      %p34 = pneg %p28
      %p35 = scmp.eq.s32.totalorder %s19, 1
      %p36 = por %p34, %p35
      %p37 = scmp.ne.s32.totalorder %s29, %s32
      %p38 = scmp.eq.s32.totalorder %s19, 0
      %p39 = por %p37, %p38
      %p40 = scmp.ne.s32.totalorder %s29, %s32
      %p41 = scmp.eq.s32.totalorder %s24, 1
      %p42 = por %p40, %p41
      %p43 = scmp.ne.s32.totalorder %s32, %s33
      %p44 = scmp.eq.s32.totalorder %s24, 0
      %p45 = por %p43, %p44
      %p46 = scmp.ne.s32.totalorder %s32, %s33
      %p47 = scmp.eq.s32.totalorder %s25, 1
      %p48 = por %p46, %p47
      %p50 = scmp.ne.s32.totalorder %s33, %s49
      %p51 = scmp.eq.s32.totalorder %s25, 0
      %p52 = por %p50, %p51
      %s54 = sadd.s32 %s53, 1
      %p57 = scmp.eq.s32.totalorder %s19, 1
      %p58 = scmp.ne.s32.totalorder %s53, %s55
      %p59 = scmp.eq.s32.totalorder %s19, 0
      %p60 = por %p58, %p59
      %p61 = scmp.ne.s32.totalorder %s53, %s55
      %p62 = scmp.eq.s32.totalorder %s24, 1
      %p63 = por %p61, %p62
      %p64 = scmp.ne.s32.totalorder %s55, %s56
      %p65 = scmp.eq.s32.totalorder %s24, 0
      %p66 = por %p64, %p65
      %p67 = scmp.ne.s32.totalorder %s55, %s56
      %p68 = scmp.eq.s32.totalorder %s25, 1
      %p69 = por %p67, %p68
      %p71 = scmp.ne.s32.totalorder %s56, %s70
      %p72 = scmp.eq.s32.totalorder %s25, 0
      %p73 = por %p71, %p72
      %s75 = sadd.s32 %s74, 1
      %p78 = scmp.eq.s32.totalorder %s19, 1
      %p79 = scmp.ne.s32.totalorder %s74, %s76
      %p80 = scmp.eq.s32.totalorder %s19, 0
      %p81 = por %p79, %p80
      %p82 = scmp.ne.s32.totalorder %s74, %s76
      %p83 = scmp.eq.s32.totalorder %s24, 1
      %p84 = por %p82, %p83
      %p85 = scmp.ne.s32.totalorder %s76, %s77
      %p86 = scmp.eq.s32.totalorder %s24, 0
      %p87 = por %p85, %p86
      %p88 = scmp.ne.s32.totalorder %s76, %s77
      %p89 = scmp.eq.s32.totalorder %s25, 1
      %p90 = por %p88, %p89
      %p92 = scmp.ne.s32.totalorder %s77, %s91
      %p93 = scmp.eq.s32.totalorder %s25, 0
      %p94 = por %p92, %p93
      %s96 = sadd.s32 %s95, 1
      %p99 = scmp.eq.s32.totalorder %s19, 1
      %p100 = scmp.ne.s32.totalorder %s95, %s97
      %p101 = scmp.eq.s32.totalorder %s19, 0
      %p102 = por %p100, %p101
      %p103 = scmp.ne.s32.totalorder %s95, %s97
      %p104 = scmp.eq.s32.totalorder %s24, 1
      %p105 = por %p103, %p104
      %p106 = scmp.ne.s32.totalorder %s97, %s98
      %p107 = scmp.eq.s32.totalorder %s24, 0
      %p108 = por %p106, %p107
      %p109 = scmp.ne.s32.totalorder %s97, %s98
      %p110 = scmp.eq.s32.totalorder %s25, 1
      %p111 = por %p109, %p110
      %p113 = scmp.ne.s32.totalorder %s98, %s112
      %p114 = scmp.eq.s32.totalorder %s25, 0
      %p115 = por %p113, %p114
      %s117 = sadd.s32 %s116, 1
      %p120 = scmp.eq.s32.totalorder %s19, 1
      %p121 = scmp.ne.s32.totalorder %s116, %s118
      %p122 = scmp.eq.s32.totalorder %s19, 0
      %p123 = por %p121, %p122
      %p124 = scmp.ne.s32.totalorder %s116, %s118
      %p125 = scmp.eq.s32.totalorder %s24, 1
      %p126 = por %p124, %p125
      %p127 = scmp.ne.s32.totalorder %s118, %s119
      %p128 = scmp.eq.s32.totalorder %s24, 0
      %p129 = por %p127, %p128
      %p130 = scmp.ne.s32.totalorder %s118, %s119
      %p131 = scmp.eq.s32.totalorder %s25, 1
      %p132 = por %p130, %p131
      %p134 = scmp.ne.s32.totalorder %s119, %s133
      %p135 = scmp.eq.s32.totalorder %s25, 0
      %p136 = por %p134, %p135
      %s138 = sadd.s32 %s137, 1
      %p141 = scmp.eq.s32.totalorder %s19, 1
      %p142 = scmp.ne.s32.totalorder %s137, %s139
      %p143 = scmp.eq.s32.totalorder %s19, 0
      %p144 = por %p142, %p143
      %p145 = scmp.ne.s32.totalorder %s137, %s139
      %p146 = scmp.eq.s32.totalorder %s24, 1
      %p147 = por %p145, %p146
      %p148 = scmp.ne.s32.totalorder %s139, %s140
      %p149 = scmp.eq.s32.totalorder %s24, 0
      %p150 = por %p148, %p149
      %p151 = scmp.ne.s32.totalorder %s139, %s140
      %p152 = scmp.eq.s32.totalorder %s25, 1
      %p153 = por %p151, %p152
      %p155 = scmp.ne.s32.totalorder %s140, %s154
      %p156 = scmp.eq.s32.totalorder %s25, 0
      %p157 = por %p155, %p156
      %s159 = sadd.s32 %s158, 1
      %p162 = scmp.eq.s32.totalorder %s19, 1
      %p163 = scmp.ne.s32.totalorder %s158, %s160
      %p164 = scmp.eq.s32.totalorder %s19, 0
      %p165 = por %p163, %p164
      %p166 = scmp.ne.s32.totalorder %s158, %s160
      %p167 = scmp.eq.s32.totalorder %s24, 1
      %p168 = por %p166, %p167
      %p169 = scmp.ne.s32.totalorder %s160, %s161
      %p170 = scmp.eq.s32.totalorder %s24, 0
      %p171 = por %p169, %p170
      %p172 = scmp.ne.s32.totalorder %s160, %s161
      %p173 = scmp.eq.s32.totalorder %s25, 1
      %p174 = por %p172, %p173
      %p176 = scmp.ne.s32.totalorder %s161, %s175
      %p177 = scmp.eq.s32.totalorder %s25, 0
      %p178 = por %p176, %p177
      %s179 = ssub.s32 %s19, %s26
      %p180 = scmp.eq.s32.totalorder %s179, 0
      %s182 = sadd.s32 %s181, 1
      %s183 = scalar_select %p180, %s181, %s182
      %p186 = pneg %p180
      %p187 = scmp.eq.s32.totalorder %s19, 1
      %p188 = por %p186, %p187
      %p189 = scmp.ne.s32.totalorder %s181, %s184
      %p190 = scmp.eq.s32.totalorder %s19, 0
      %p191 = por %p189, %p190
      %p192 = scmp.ne.s32.totalorder %s181, %s184
      %p193 = scmp.eq.s32.totalorder %s24, 1
      %p194 = por %p192, %p193
      %p195 = scmp.ne.s32.totalorder %s184, %s185
      %p196 = scmp.eq.s32.totalorder %s24, 0
      %p197 = por %p195, %p196
      %p198 = scmp.ne.s32.totalorder %s184, %s185
      %p199 = scmp.eq.s32.totalorder %s25, 1
      %p200 = por %p198, %p199
      %p202 = scmp.ne.s32.totalorder %s185, %s201
      %p203 = scmp.eq.s32.totalorder %s25, 0
      %p204 = por %p202, %p203
      %p205 = scmp.le.s32.totalorder 1, %s19
      %p206 = scmp.lt.s32.totalorder %s19, 3
      %p207 = pnand %p205, %p206
      %p208 = pneg %p207
      // Predicated region
      $region9: #{tpu_custom_call.1} parent=5 // pred_check
        _
      $region10: #{tpu_custom_call.1} parent=5 // pred_check_branch
        %210 = sbr.rel (%p207) target = $region12
      $region11: #{tpu_custom_call.1} parent=5 // pred_region
        %s211 = ssub.s32 %s19, 1
        // Predicated region
        $region13: #{tpu_custom_call.1} parent=11 // pred_check
          %p212 = pneg %p66
        $region14: #{tpu_custom_call.1} parent=11 // pred_check_branch
          %214 = sbr.rel (%p212) target = $region16
        $region15: #{tpu_custom_call.1} parent=11 // pred_region
          _
        $region16: #{tpu_custom_call.1} parent=11 // pred_fallthru
          _
        // Predicated region
        $region17: #{tpu_custom_call.1} parent=11 // pred_check
          %p215 = pneg %p87
        $region18: #{tpu_custom_call.1} parent=11 // pred_check_branch
          %217 = sbr.rel (%p215) target = $region20
        $region19: #{tpu_custom_call.1} parent=11 // pred_region
          _
        $region20: #{tpu_custom_call.1} parent=11 // pred_fallthru
          _
        // Predicated region
        $region21: #{tpu_custom_call.1} parent=11 // pred_check
          %p218 = pneg %p108
        $region22: #{tpu_custom_call.1} parent=11 // pred_check_branch
          %220 = sbr.rel (%p218) target = $region24
        $region23: #{tpu_custom_call.1} parent=11 // pred_region
          _
        $region24: #{tpu_custom_call.1} parent=11 // pred_fallthru
          _
        // Predicated region
        $region25: #{tpu_custom_call.1} parent=11 // pred_check
          %p221 = pneg %p129
        $region26: #{tpu_custom_call.1} parent=11 // pred_check_branch
          %223 = sbr.rel (%p221) target = $region28
        $region27: #{tpu_custom_call.1} parent=11 // pred_region
          _
        $region28: #{tpu_custom_call.1} parent=11 // pred_fallthru
          _
        // Predicated region
        $region29: #{tpu_custom_call.1} parent=11 // pred_check
          %p224 = pneg %p150
        $region30: #{tpu_custom_call.1} parent=11 // pred_check_branch
          %226 = sbr.rel (%p224) target = $region32
        $region31: #{tpu_custom_call.1} parent=11 // pred_region
          _
        $region32: #{tpu_custom_call.1} parent=11 // pred_fallthru
          _
        // Predicated region
        $region33: #{tpu_custom_call.1} parent=11 // pred_check
          %p227 = pneg %p171
        $region34: #{tpu_custom_call.1} parent=11 // pred_check_branch
          %229 = sbr.rel (%p227) target = $region36
        $region35: #{tpu_custom_call.1} parent=11 // pred_region
          _
        $region36: #{tpu_custom_call.1} parent=11 // pred_fallthru
          _
      $region12: #{tpu_custom_call.1} parent=5 // pred_fallthru
        _
      %p230 = scmp.lt.s32.totalorder %s19, 2
      // Predicated region
      $region37: #{tpu_custom_call.1} parent=5 // pred_check
        %p231 = pneg %p230
      $region38: #{tpu_custom_call.1} parent=5 // pred_check_branch
        %233 = sbr.rel (%p231) target = $region40
      $region39: #{tpu_custom_call.1} parent=5 // pred_region
        // Predicated region
        $region41: #{tpu_custom_call.1} parent=39 // pred_check
          %p234 = pneg %p39
        $region42: #{tpu_custom_call.1} parent=39 // pred_check_branch
          %236 = sbr.rel (%p234) target = $region44
        $region43: #{tpu_custom_call.1} parent=39 // pred_region
          %s237 = sand.u32 %s29, 1
          %s238 = scalar_lea.sflag [#allocation4], %s237
          %s239 = sand.u32 %s29, 1
          %s240 = smul.addr %s239, 256
          %s241 = scalar_lea.vmem [#allocation3], %s240
          %243 = vsyncadd %s238, 0
          %s244 = smul.addr %s19, 32
          %s245 = smul.addr %s244, 8
          %s246 = scalar_lea.hbm %s0, %s245
          %s247 = sshll.u32 %s246, 4
          %s248 = int_to_ptr.hbm [resolvable:$true] %s247
          %s249 = sshll.u32 %s241, 4
          %s250 = int_to_ptr.vmem [resolvable:$true] %s249
          %255 = dma.hbm_to_vmem [thread:$0]  %s248, 4096, %s250, %s238, 128, 128, 8
        $region44: #{tpu_custom_call.1} parent=39 // pred_fallthru
          _
      $region40: #{tpu_custom_call.1} parent=5 // pred_fallthru
        _
      %p256 = scmp.le.s32.totalorder 1, %s19
      %p257 = scmp.lt.s32.totalorder %s19, 3
      %p258 = pnand %p256, %p257
      %p259 = pneg %p258
      // Predicated region
      $region45: #{tpu_custom_call.1} parent=5 // pred_check
        _
      $region46: #{tpu_custom_call.1} parent=5 // pred_check_branch
        %261 = sbr.rel (%p258) target = $region48
      $region47: #{tpu_custom_call.1} parent=5 // pred_region
        %s262 = ssub.s32 %s19, 1
        %s263 = sand.u32 %s32, 1
        %s264 = scalar_lea.sflag [#allocation4], %s263
        %s265 = sand.u32 %s32, 1
        %s266 = smul.addr %s265, 256
        %s267 = scalar_lea.vmem [#allocation3], %s266
        // Predicated region
        $region49: #{tpu_custom_call.1} parent=47 // pred_check
          %p268 = pneg %p45
        $region50: #{tpu_custom_call.1} parent=47 // pred_check_branch
          %270 = sbr.rel (%p268) target = $region52
        $region51: #{tpu_custom_call.1} parent=47 // pred_region
          %272 = dma.done %s264, 4096
        $region52: #{tpu_custom_call.1} parent=47 // pred_fallthru
          _
        %s273 = sand.u32 %s32, 1
        %s274 = scalar_lea.sflag [#allocation4], %s273
        %s275 = sand.u32 %s32, 1
        %s276 = smul.addr %s275, 256
        %s277 = scalar_lea.vmem [#allocation3], %s276
        %p278 = pneg %p45
        %p279 = pneg %p42
        %p280 = pneg %p66
        %p281 = pneg %p63
        %p282 = pneg %p87
        %p283 = pneg %p84
        %p284 = pneg %p108
        %p285 = pneg %p105
        %p286 = pneg %p129
        %p287 = pneg %p126
        %p288 = pneg %p150
        %p289 = pneg %p147
        %p290 = pneg %p171
        %p291 = pneg %p168
        %p292 = pneg %p197
        %p293 = pneg %p194
        %s294 = sand.u32 %s184, 1
        %s295 = scalar_lea.sflag [#allocation5], %s294
        %s296 = sand.u32 %s184, 1
        %s297 = smul.addr %s296, 256
        %s298 = scalar_lea.vmem [#allocation6], %s297
        %v300 = vld [vmem:[%s267] sm:$0xff]
        %v301 = vld [vmem:[%s267 + $0x8] sm:$0xff]
        %v302 = vld [vmem:[%s267 + $0x10] sm:$0xff]
        %v303 = vld [vmem:[%s267 + $0x18] sm:$0xff]
        %v304 = vld [vmem:[%s267 + $0x20] sm:$0xff]
        %v305 = vld [vmem:[%s267 + $0x28] sm:$0xff]
        %v306 = vld [vmem:[%s267 + $0x30] sm:$0xff]
        %v307 = vld [vmem:[%s267 + $0x38] sm:$0xff]
        %v308 = vld [vmem:[%s267 + $0x40] sm:$0xff]
        %v309 = vld [vmem:[%s267 + $0x48] sm:$0xff]
        %v310 = vld [vmem:[%s267 + $0x50] sm:$0xff]
        %v311 = vld [vmem:[%s267 + $0x58] sm:$0xff]
        %v312 = vld [vmem:[%s267 + $0x60] sm:$0xff]
        %v313 = vld [vmem:[%s267 + $0x68] sm:$0xff]
        %v314 = vld [vmem:[%s267 + $0x70] sm:$0xff]
        %v315 = vld [vmem:[%s267 + $0x78] sm:$0xff]
        %v316 = vld [vmem:[%s267 + $0x80] sm:$0xff]
        %v317 = vld [vmem:[%s267 + $0x88] sm:$0xff]
        %v318 = vld [vmem:[%s267 + $0x90] sm:$0xff]
        %v319 = vld [vmem:[%s267 + $0x98] sm:$0xff]
        %v320 = vld [vmem:[%s267 + $0xa0] sm:$0xff]
        %v321 = vld [vmem:[%s267 + $0xa8] sm:$0xff]
        %v322 = vld [vmem:[%s267 + $0xb0] sm:$0xff]
        %v323 = vld [vmem:[%s267 + $0xb8] sm:$0xff]
        %v324 = vld [vmem:[%s267 + $0xc0] sm:$0xff]
        %v325 = vld [vmem:[%s267 + $0xc8] sm:$0xff]
        %v326 = vld [vmem:[%s267 + $0xd0] sm:$0xff]
        %v327 = vld [vmem:[%s267 + $0xd8] sm:$0xff]
        %v328 = vld [vmem:[%s267 + $0xe0] sm:$0xff]
        %v329 = vld [vmem:[%s267 + $0xe8] sm:$0xff]
        %v330 = vld [vmem:[%s267 + $0xf0] sm:$0xff]
        %v331 = vld [vmem:[%s267 + $0xf8] sm:$0xff]
        %v332 = vpack.c.bf16 %v300, %v300
        %v333 = vpack.c.bf16 %v301, %v301
        %v334 = vpack.c.bf16 %v302, %v302
        %v335 = vpack.c.bf16 %v303, %v303
        %v336 = vpack.c.bf16 %v304, %v304
        %v337 = vpack.c.bf16 %v305, %v305
        %v338 = vpack.c.bf16 %v306, %v306
        %v339 = vpack.c.bf16 %v307, %v307
        %v340 = vpack.c.bf16 %v308, %v308
        %v341 = vpack.c.bf16 %v309, %v309
        %v342 = vpack.c.bf16 %v310, %v310
        %v343 = vpack.c.bf16 %v311, %v311
        %v344 = vpack.c.bf16 %v312, %v312
        %v345 = vpack.c.bf16 %v313, %v313
        %v346 = vpack.c.bf16 %v314, %v314
        %v347 = vpack.c.bf16 %v315, %v315
        %v348 = vpack.c.bf16 %v316, %v316
        %v349 = vpack.c.bf16 %v317, %v317
        %v350 = vpack.c.bf16 %v318, %v318
        %v351 = vpack.c.bf16 %v319, %v319
        %v352 = vpack.c.bf16 %v320, %v320
        %v353 = vpack.c.bf16 %v321, %v321
        %v354 = vpack.c.bf16 %v322, %v322
        %v355 = vpack.c.bf16 %v323, %v323
        %v356 = vpack.c.bf16 %v324, %v324
        %v357 = vpack.c.bf16 %v325, %v325
        %v358 = vpack.c.bf16 %v326, %v326
        %v359 = vpack.c.bf16 %v327, %v327
        %v360 = vpack.c.bf16 %v328, %v328
        %v361 = vpack.c.bf16 %v329, %v329
        %v362 = vpack.c.bf16 %v330, %v330
        %v363 = vpack.c.bf16 %v331, %v331
        %v364 = vld [vmem:[%s1] sm:$0xf]
        %v365 = vld [vmem:[%s1 + $0x4] sm:$0xf]
        %v366 = vld [vmem:[%s1 + $0x8] sm:$0xf]
        %v367 = vld [vmem:[%s1 + $0xc] sm:$0xf]
        %v368 = vld [vmem:[%s1 + $0x10] sm:$0xf]
        %v369 = vld [vmem:[%s1 + $0x14] sm:$0xf]
        %v370 = vld [vmem:[%s1 + $0x18] sm:$0xf]
        %v371 = vld [vmem:[%s1 + $0x1c] sm:$0xf]
        %v372 = vld [vmem:[%s1 + $0x20] sm:$0xf]
        %v373 = vld [vmem:[%s1 + $0x24] sm:$0xf]
        %v374 = vld [vmem:[%s1 + $0x28] sm:$0xf]
        %v375 = vld [vmem:[%s1 + $0x2c] sm:$0xf]
        %v376 = vld [vmem:[%s1 + $0x30] sm:$0xf]
        %v377 = vld [vmem:[%s1 + $0x34] sm:$0xf]
        %v378 = vld [vmem:[%s1 + $0x38] sm:$0xf]
        %v379 = vld [vmem:[%s1 + $0x3c] sm:$0xf]
        %v380 = vld [vmem:[%s4] sm:$0x1]
        %v382 = vperm.slane %v380, 0
        %v416 = vunpack.c.l.b16 %v332
        %v417 = vunpack.c.l.b16 %v333
        %v418 = vunpack.c.l.b16 %v334
        %v419 = vunpack.c.l.b16 %v335
        %v420 = vunpack.c.l.b16 %v336
        %v421 = vunpack.c.l.b16 %v337
        %v422 = vunpack.c.l.b16 %v338
        %v423 = vunpack.c.l.b16 %v339
        %v424 = vunpack.c.l.b16 %v340
        %v425 = vunpack.c.l.b16 %v341
        %v426 = vunpack.c.l.b16 %v342
        %v427 = vunpack.c.l.b16 %v343
        %v428 = vunpack.c.l.b16 %v344
        %v429 = vunpack.c.l.b16 %v345
        %v430 = vunpack.c.l.b16 %v346
        %v431 = vunpack.c.l.b16 %v347
        %v432 = vunpack.c.l.b16 %v348
        %v433 = vunpack.c.l.b16 %v349
        %v434 = vunpack.c.l.b16 %v350
        %v435 = vunpack.c.l.b16 %v351
        %v436 = vunpack.c.l.b16 %v352
        %v437 = vunpack.c.l.b16 %v353
        %v438 = vunpack.c.l.b16 %v354
        %v439 = vunpack.c.l.b16 %v355
        %v440 = vunpack.c.l.b16 %v356
        %v441 = vunpack.c.l.b16 %v357
        %v442 = vunpack.c.l.b16 %v358
        %v443 = vunpack.c.l.b16 %v359
        %v444 = vunpack.c.l.b16 %v360
        %v445 = vunpack.c.l.b16 %v361
        %v446 = vunpack.c.l.b16 %v362
        %v447 = vunpack.c.l.b16 %v363
        %v448 = vpack.c.b16 %v417, %v416
        %v449 = vpack.c.b16 %v419, %v418
        %v450 = vpack.c.b16 %v421, %v420
        %v451 = vpack.c.b16 %v423, %v422
        %v452 = vpack.c.b16 %v425, %v424
        %v453 = vpack.c.b16 %v427, %v426
        %v454 = vpack.c.b16 %v429, %v428
        %v455 = vpack.c.b16 %v431, %v430
        %v456 = vpack.c.b16 %v433, %v432
        %v457 = vpack.c.b16 %v435, %v434
        %v458 = vpack.c.b16 %v437, %v436
        %v459 = vpack.c.b16 %v439, %v438
        %v460 = vpack.c.b16 %v441, %v440
        %v461 = vpack.c.b16 %v443, %v442
        %v462 = vpack.c.b16 %v445, %v444
        %v463 = vpack.c.b16 %v447, %v446
        %v496 = vunpack.c.l.b16 %v364
        %v497 = vunpack.c.l.b16 %v365
        %v498 = vunpack.c.l.b16 %v366
        %v499 = vunpack.c.l.b16 %v367
        %v500 = vunpack.c.l.b16 %v368
        %v501 = vunpack.c.l.b16 %v369
        %v502 = vunpack.c.l.b16 %v370
        %v503 = vunpack.c.l.b16 %v371
        %v504 = vunpack.c.l.b16 %v372
        %v505 = vunpack.c.l.b16 %v373
        %v506 = vunpack.c.l.b16 %v374
        %v507 = vunpack.c.l.b16 %v375
        %v508 = vunpack.c.l.b16 %v376
        %v509 = vunpack.c.l.b16 %v377
        %v510 = vunpack.c.l.b16 %v378
        %v511 = vunpack.c.l.b16 %v379
        %v512 = vpack.c.b16 %v497, %v496
        %v513 = vpack.c.b16 %v499, %v498
        %v514 = vpack.c.b16 %v501, %v500
        %v515 = vpack.c.b16 %v503, %v502
        %v516 = vpack.c.b16 %v505, %v504
        %v517 = vpack.c.b16 %v507, %v506
        %v518 = vpack.c.b16 %v509, %v508
        %v519 = vpack.c.b16 %v511, %v510
        %528 = vmatpush.bf16.msra.mxu0 %v519
        %529 = vmatpush.bf16.msra.mxu0 %v518
        %530 = vmatpush.bf16.msra.mxu0 %v517
        %531 = vmatpush.bf16.msra.mxu0 %v516
        %532 = vmatpush.bf16.msra.mxu0 %v515
        %533 = vmatpush.bf16.msra.mxu0 %v514
        %534 = vmatpush.bf16.msra.mxu0 %v513
        %535 = vmatpush.bf16.msra.mxu0 %v512
        %536 = vmatmul.bf16.gmra.mxu0 %v448
        %v537 = vpop.f32.mrf.mxu0
        %v538 = vadd.f32 %v382, %v537
        %v539 = vpop.f32.mrf.mxu0
        %v540 = vadd.f32 %v382, %v539
        %541 = vmatmul.bf16.gmra.mxu0 %v449
        %v542 = vpop.f32.mrf.mxu0
        %v543 = vadd.f32 %v382, %v542
        %v544 = vpop.f32.mrf.mxu0
        %v545 = vadd.f32 %v382, %v544
        %546 = vmatmul.bf16.gmra.mxu0 %v450
        %v547 = vpop.f32.mrf.mxu0
        %v548 = vadd.f32 %v382, %v547
        %v549 = vpop.f32.mrf.mxu0
        %v550 = vadd.f32 %v382, %v549
        %551 = vmatmul.bf16.gmra.mxu0 %v451
        %v552 = vpop.f32.mrf.mxu0
        %v553 = vadd.f32 %v382, %v552
        %v554 = vpop.f32.mrf.mxu0
        %v555 = vadd.f32 %v382, %v554
        %556 = vmatmul.bf16.gmra.mxu0 %v452
        %v557 = vpop.f32.mrf.mxu0
        %v558 = vadd.f32 %v382, %v557
        %v559 = vpop.f32.mrf.mxu0
        %v560 = vadd.f32 %v382, %v559
        %561 = vmatmul.bf16.gmra.mxu0 %v453
        %v562 = vpop.f32.mrf.mxu0
        %v563 = vadd.f32 %v382, %v562
        %v564 = vpop.f32.mrf.mxu0
        %v565 = vadd.f32 %v382, %v564
        %566 = vmatmul.bf16.gmra.mxu0 %v454
        %v567 = vpop.f32.mrf.mxu0
        %v568 = vadd.f32 %v382, %v567
        %v569 = vpop.f32.mrf.mxu0
        %v570 = vadd.f32 %v382, %v569
        %571 = vmatmul.bf16.gmra.mxu0 %v455
        %v572 = vpop.f32.mrf.mxu0
        %v573 = vadd.f32 %v382, %v572
        %v574 = vpop.f32.mrf.mxu0
        %v575 = vadd.f32 %v382, %v574
        %576 = vmatmul.bf16.gmra.mxu0 %v456
        %v577 = vpop.f32.mrf.mxu0
        %v578 = vadd.f32 %v382, %v577
        %v579 = vpop.f32.mrf.mxu0
        %v580 = vadd.f32 %v382, %v579
        %581 = vmatmul.bf16.gmra.mxu0 %v457
        %v582 = vpop.f32.mrf.mxu0
        %v583 = vadd.f32 %v382, %v582
        %v584 = vpop.f32.mrf.mxu0
        %v585 = vadd.f32 %v382, %v584
        %586 = vmatmul.bf16.gmra.mxu0 %v458
        %v587 = vpop.f32.mrf.mxu0
        %v588 = vadd.f32 %v382, %v587
        %v589 = vpop.f32.mrf.mxu0
        %v590 = vadd.f32 %v382, %v589
        %591 = vmatmul.bf16.gmra.mxu0 %v459
        %v592 = vpop.f32.mrf.mxu0
        %v593 = vadd.f32 %v382, %v592
        %v594 = vpop.f32.mrf.mxu0
        %v595 = vadd.f32 %v382, %v594
        %596 = vmatmul.bf16.gmra.mxu0 %v460
        %v597 = vpop.f32.mrf.mxu0
        %v598 = vadd.f32 %v382, %v597
        %v599 = vpop.f32.mrf.mxu0
        %v600 = vadd.f32 %v382, %v599
        %601 = vmatmul.bf16.gmra.mxu0 %v461
        %v602 = vpop.f32.mrf.mxu0
        %v603 = vadd.f32 %v382, %v602
        %v604 = vpop.f32.mrf.mxu0
        %v605 = vadd.f32 %v382, %v604
        %606 = vmatmul.bf16.gmra.mxu0 %v462
        %v607 = vpop.f32.mrf.mxu0
        %v608 = vadd.f32 %v382, %v607
        %v609 = vpop.f32.mrf.mxu0
        %v610 = vadd.f32 %v382, %v609
        %611 = vmatmul.bf16.gmra.mxu0 %v463
        %v612 = vpop.f32.mrf.mxu0
        %v613 = vadd.f32 %v382, %v612
        %v614 = vpop.f32.mrf.mxu0
        %v615 = vadd.f32 %v382, %v614
        %616 = vdwg.mxu0
        %v617 = vmax.f32 %v538, 0.0
        %v618 = vmax.f32 %v540, 0.0
        %v619 = vmax.f32 %v543, 0.0
        %v620 = vmax.f32 %v545, 0.0
        %v621 = vmax.f32 %v548, 0.0
        %v622 = vmax.f32 %v550, 0.0
        %v623 = vmax.f32 %v553, 0.0
        %v624 = vmax.f32 %v555, 0.0
        %v625 = vmax.f32 %v558, 0.0
        %v626 = vmax.f32 %v560, 0.0
        %v627 = vmax.f32 %v563, 0.0
        %v628 = vmax.f32 %v565, 0.0
        %v629 = vmax.f32 %v568, 0.0
        %v630 = vmax.f32 %v570, 0.0
        %v631 = vmax.f32 %v573, 0.0
        %v632 = vmax.f32 %v575, 0.0
        %v633 = vmax.f32 %v578, 0.0
        %v634 = vmax.f32 %v580, 0.0
        %v635 = vmax.f32 %v583, 0.0
        %v636 = vmax.f32 %v585, 0.0
        %v637 = vmax.f32 %v588, 0.0
        %v638 = vmax.f32 %v590, 0.0
        %v639 = vmax.f32 %v593, 0.0
        %v640 = vmax.f32 %v595, 0.0
        %v641 = vmax.f32 %v598, 0.0
        %v642 = vmax.f32 %v600, 0.0
        %v643 = vmax.f32 %v603, 0.0
        %v644 = vmax.f32 %v605, 0.0
        %v645 = vmax.f32 %v608, 0.0
        %v646 = vmax.f32 %v610, 0.0
        %v647 = vmax.f32 %v613, 0.0
        %v648 = vmax.f32 %v615, 0.0
        %v649 = vpack.c.bf16 %v617, %v617
        %v650 = vpack.c.bf16 %v618, %v618
        %v651 = vpack.c.bf16 %v619, %v619
        %v652 = vpack.c.bf16 %v620, %v620
        %v653 = vpack.c.bf16 %v621, %v621
        %v654 = vpack.c.bf16 %v622, %v622
        %v655 = vpack.c.bf16 %v623, %v623
        %v656 = vpack.c.bf16 %v624, %v624
        %v657 = vpack.c.bf16 %v625, %v625
        %v658 = vpack.c.bf16 %v626, %v626
        %v659 = vpack.c.bf16 %v627, %v627
        %v660 = vpack.c.bf16 %v628, %v628
        %v661 = vpack.c.bf16 %v629, %v629
        %v662 = vpack.c.bf16 %v630, %v630
        %v663 = vpack.c.bf16 %v631, %v631
        %v664 = vpack.c.bf16 %v632, %v632
        %v665 = vpack.c.bf16 %v633, %v633
        %v666 = vpack.c.bf16 %v634, %v634
        %v667 = vpack.c.bf16 %v635, %v635
        %v668 = vpack.c.bf16 %v636, %v636
        %v669 = vpack.c.bf16 %v637, %v637
        %v670 = vpack.c.bf16 %v638, %v638
        %v671 = vpack.c.bf16 %v639, %v639
        %v672 = vpack.c.bf16 %v640, %v640
        %v673 = vpack.c.bf16 %v641, %v641
        %v674 = vpack.c.bf16 %v642, %v642
        %v675 = vpack.c.bf16 %v643, %v643
        %v676 = vpack.c.bf16 %v644, %v644
        %v677 = vpack.c.bf16 %v645, %v645
        %v678 = vpack.c.bf16 %v646, %v646
        %v679 = vpack.c.bf16 %v647, %v647
        %v680 = vpack.c.bf16 %v648, %v648
        %v713 = vunpack.c.l.b16 %v649
        %v714 = vunpack.c.l.b16 %v650
        %v715 = vunpack.c.l.b16 %v651
        %v716 = vunpack.c.l.b16 %v652
        %v717 = vunpack.c.l.b16 %v653
        %v718 = vunpack.c.l.b16 %v654
        %v719 = vunpack.c.l.b16 %v655
        %v720 = vunpack.c.l.b16 %v656
        %v721 = vunpack.c.l.b16 %v657
        %v722 = vunpack.c.l.b16 %v658
        %v723 = vunpack.c.l.b16 %v659
        %v724 = vunpack.c.l.b16 %v660
        %v725 = vunpack.c.l.b16 %v661
        %v726 = vunpack.c.l.b16 %v662
        %v727 = vunpack.c.l.b16 %v663
        %v728 = vunpack.c.l.b16 %v664
        %v729 = vunpack.c.l.b16 %v665
        %v730 = vunpack.c.l.b16 %v666
        %v731 = vunpack.c.l.b16 %v667
        %v732 = vunpack.c.l.b16 %v668
        %v733 = vunpack.c.l.b16 %v669
        %v734 = vunpack.c.l.b16 %v670
        %v735 = vunpack.c.l.b16 %v671
        %v736 = vunpack.c.l.b16 %v672
        %v737 = vunpack.c.l.b16 %v673
        %v738 = vunpack.c.l.b16 %v674
        %v739 = vunpack.c.l.b16 %v675
        %v740 = vunpack.c.l.b16 %v676
        %v741 = vunpack.c.l.b16 %v677
        %v742 = vunpack.c.l.b16 %v678
        %v743 = vunpack.c.l.b16 %v679
        %v744 = vunpack.c.l.b16 %v680
        %v745 = vpack.c.b16 %v714, %v713
        %v746 = vpack.c.b16 %v716, %v715
        %v747 = vpack.c.b16 %v718, %v717
        %v748 = vpack.c.b16 %v720, %v719
        %v749 = vpack.c.b16 %v722, %v721
        %v750 = vpack.c.b16 %v724, %v723
        %v751 = vpack.c.b16 %v726, %v725
        %v752 = vpack.c.b16 %v728, %v727
        %v753 = vpack.c.b16 %v730, %v729
        %v754 = vpack.c.b16 %v732, %v731
        %v755 = vpack.c.b16 %v734, %v733
        %v756 = vpack.c.b16 %v736, %v735
        %v757 = vpack.c.b16 %v738, %v737
        %v758 = vpack.c.b16 %v740, %v739
        %v759 = vpack.c.b16 %v742, %v741
        %v760 = vpack.c.b16 %v744, %v743
        %v761 = vrot.slane %v745, 7
        %v762 = vrot.slane %v746, 7
        %v763 = vrot.slane %v747, 7
        %v764 = vrot.slane %v748, 7
        %v765 = vrot.slane %v749, 7
        %v766 = vrot.slane %v750, 7
        %v767 = vrot.slane %v751, 7
        %v768 = vrot.slane %v752, 7
        %v769 = vrot.slane %v753, 7
        %v770 = vrot.slane %v754, 7
        %v771 = vrot.slane %v755, 7
        %v772 = vrot.slane %v756, 7
        %v773 = vrot.slane %v757, 7
        %v774 = vrot.slane %v758, 7
        %v775 = vrot.slane %v759, 7
        %v776 = vrot.slane %v760, 7
        %vm777 = vcmask 1040384
        %v780 = vsel %vm777, 0, %v761
        %v782 = vsel %vm777, 0, %v762
        %v784 = vsel %vm777, 0, %v763
        %v786 = vsel %vm777, 0, %v764
        %v788 = vsel %vm777, 0, %v765
        %v790 = vsel %vm777, 0, %v766
        %v792 = vsel %vm777, 0, %v767
        %v794 = vsel %vm777, 0, %v768
        %v796 = vsel %vm777, 0, %v769
        %v798 = vsel %vm777, 0, %v770
        %v800 = vsel %vm777, 0, %v771
        %v802 = vsel %vm777, 0, %v772
        %v804 = vsel %vm777, 0, %v773
        %v806 = vsel %vm777, 0, %v774
        %v808 = vsel %vm777, 0, %v775
        %v810 = vsel %vm777, 0, %v776
        %v811 = vrot.slane %v745, 1
        %v812 = vrot.slane %v746, 1
        %v813 = vrot.slane %v747, 1
        %v814 = vrot.slane %v748, 1
        %v815 = vrot.slane %v749, 1
        %v816 = vrot.slane %v750, 1
        %v817 = vrot.slane %v751, 1
        %v818 = vrot.slane %v752, 1
        %v819 = vrot.slane %v753, 1
        %v820 = vrot.slane %v754, 1
        %v821 = vrot.slane %v755, 1
        %v822 = vrot.slane %v756, 1
        %v823 = vrot.slane %v757, 1
        %v824 = vrot.slane %v758, 1
        %v825 = vrot.slane %v759, 1
        %v826 = vrot.slane %v760, 1
        %vm827 = vcmask 1046528
        %v829 = vsel %vm827, %v811, 0
        %v831 = vsel %vm827, %v812, 0
        %v833 = vsel %vm827, %v813, 0
        %v835 = vsel %vm827, %v814, 0
        %v837 = vsel %vm827, %v815, 0
        %v839 = vsel %vm827, %v816, 0
        %v841 = vsel %vm827, %v817, 0
        %v843 = vsel %vm827, %v818, 0
        %v845 = vsel %vm827, %v819, 0
        %v847 = vsel %vm827, %v820, 0
        %v849 = vsel %vm827, %v821, 0
        %v851 = vsel %vm827, %v822, 0
        %v853 = vsel %vm827, %v823, 0
        %v855 = vsel %vm827, %v824, 0
        %v857 = vsel %vm827, %v825, 0
        %v859 = vsel %vm827, %v826, 0
        %860 = vrot.lane.b32.xlu0 %v745, 32
        %v861 = vpop.permute.xlu0 %860
        %862 = vrot.lane.b32.xlu0 %v746, 32
        %v863 = vpop.permute.xlu0 %862
        %864 = vrot.lane.b32.xlu0 %v747, 32
        %v865 = vpop.permute.xlu0 %864
        %866 = vrot.lane.b32.xlu0 %v748, 32
        %v867 = vpop.permute.xlu0 %866
        %868 = vrot.lane.b32.xlu0 %v749, 32
        %v869 = vpop.permute.xlu0 %868
        %870 = vrot.lane.b32.xlu0 %v750, 32
        %v871 = vpop.permute.xlu0 %870
        %872 = vrot.lane.b32.xlu0 %v751, 32
        %v873 = vpop.permute.xlu0 %872
        %874 = vrot.lane.b32.xlu0 %v752, 32
        %v875 = vpop.permute.xlu0 %874
        %876 = vrot.lane.b32.xlu0 %v753, 32
        %v877 = vpop.permute.xlu0 %876
        %878 = vrot.lane.b32.xlu0 %v754, 32
        %v879 = vpop.permute.xlu0 %878
        %880 = vrot.lane.b32.xlu0 %v755, 32
        %v881 = vpop.permute.xlu0 %880
        %882 = vrot.lane.b32.xlu0 %v756, 32
        %v883 = vpop.permute.xlu0 %882
        %884 = vrot.lane.b32.xlu0 %v757, 32
        %v885 = vpop.permute.xlu0 %884
        %886 = vrot.lane.b32.xlu0 %v758, 32
        %v887 = vpop.permute.xlu0 %886
        %888 = vrot.lane.b32.xlu0 %v759, 32
        %v889 = vpop.permute.xlu0 %888
        %890 = vrot.lane.b32.xlu0 %v760, 32
        %v891 = vpop.permute.xlu0 %890
        %908 = vrot.lane.b32.xlu0 %v829, 64
        %v909 = vpop.permute.xlu0 %908
        %910 = vrot.lane.b32.xlu0 %v831, 64
        %v911 = vpop.permute.xlu0 %910
        %912 = vrot.lane.b32.xlu0 %v833, 64
        %v913 = vpop.permute.xlu0 %912
        %914 = vrot.lane.b32.xlu0 %v835, 64
        %v915 = vpop.permute.xlu0 %914
        %916 = vrot.lane.b32.xlu0 %v837, 64
        %v917 = vpop.permute.xlu0 %916
        %918 = vrot.lane.b32.xlu0 %v839, 64
        %v919 = vpop.permute.xlu0 %918
        %920 = vrot.lane.b32.xlu0 %v841, 64
        %v921 = vpop.permute.xlu0 %920
        %922 = vrot.lane.b32.xlu0 %v843, 64
        %v923 = vpop.permute.xlu0 %922
        %924 = vrot.lane.b32.xlu0 %v845, 64
        %v925 = vpop.permute.xlu0 %924
        %926 = vrot.lane.b32.xlu0 %v847, 64
        %v927 = vpop.permute.xlu0 %926
        %928 = vrot.lane.b32.xlu0 %v849, 64
        %v929 = vpop.permute.xlu0 %928
        %930 = vrot.lane.b32.xlu0 %v851, 64
        %v931 = vpop.permute.xlu0 %930
        %932 = vrot.lane.b32.xlu0 %v853, 64
        %v933 = vpop.permute.xlu0 %932
        %934 = vrot.lane.b32.xlu0 %v855, 64
        %v935 = vpop.permute.xlu0 %934
        %936 = vrot.lane.b32.xlu0 %v857, 64
        %v937 = vpop.permute.xlu0 %936
        %938 = vrot.lane.b32.xlu0 %v859, 64
        %v939 = vpop.permute.xlu0 %938
        %vm940 = vcmask 261120
        %v942 = vsel %vm940, %v780, %v861
        %v944 = vsel %vm940, %v782, %v863
        %v946 = vsel %vm940, %v784, %v865
        %v948 = vsel %vm940, %v786, %v867
        %v950 = vsel %vm940, %v788, %v869
        %v952 = vsel %vm940, %v790, %v871
        %v954 = vsel %vm940, %v792, %v873
        %v956 = vsel %vm940, %v794, %v875
        %v958 = vsel %vm940, %v796, %v877
        %v960 = vsel %vm940, %v798, %v879
        %v962 = vsel %vm940, %v800, %v881
        %v964 = vsel %vm940, %v802, %v883
        %v966 = vsel %vm940, %v804, %v885
        %v968 = vsel %vm940, %v806, %v887
        %v970 = vsel %vm940, %v808, %v889
        %v972 = vsel %vm940, %v810, %v891
        %vm973 = vcmask 523264
        %v975 = vsel %vm973, %v942, %v909
        %v977 = vsel %vm973, %v944, %v911
        %v979 = vsel %vm973, %v946, %v913
        %v981 = vsel %vm973, %v948, %v915
        %v983 = vsel %vm973, %v950, %v917
        %v985 = vsel %vm973, %v952, %v919
        %v987 = vsel %vm973, %v954, %v921
        %v989 = vsel %vm973, %v956, %v923
        %v991 = vsel %vm973, %v958, %v925
        %v993 = vsel %vm973, %v960, %v927
        %v995 = vsel %vm973, %v962, %v929
        %v997 = vsel %vm973, %v964, %v931
        %v999 = vsel %vm973, %v966, %v933
        %v1001 = vsel %vm973, %v968, %v935
        %v1003 = vsel %vm973, %v970, %v937
        %v1005 = vsel %vm973, %v972, %v939
        %vm1006 = vcmask 785408
        %v1007 = vsel %vm1006, %v975, 0
        %v1008 = vsel %vm1006, %v977, 0
        %v1009 = vsel %vm1006, %v979, 0
        %v1010 = vsel %vm1006, %v981, 0
        %v1011 = vsel %vm1006, %v983, 0
        %v1012 = vsel %vm1006, %v985, 0
        %v1013 = vsel %vm1006, %v987, 0
        %v1014 = vsel %vm1006, %v989, 0
        %v1015 = vsel %vm1006, %v991, 0
        %v1016 = vsel %vm1006, %v993, 0
        %v1017 = vsel %vm1006, %v995, 0
        %v1018 = vsel %vm1006, %v997, 0
        %v1019 = vsel %vm1006, %v999, 0
        %v1020 = vsel %vm1006, %v1001, 0
        %v1021 = vsel %vm1006, %v1003, 0
        %v1022 = vsel %vm1006, %v1005, 0
        %1023 = vst [vmem:[#allocation2] sm:$0xf] 0
        %1024 = vst [vmem:[#allocation2 + $0x4] sm:$0xf] 0
        %1025 = vst [vmem:[#allocation2 + $0x8] sm:$0xf] 0
        %1026 = vst [vmem:[#allocation2 + $0xc] sm:$0xf] 0
        %s1027 = scalar_lea.vmem [#allocation2], 144
        %1028 = vst [vmem:[%s1027] sm:$0xf] 0
        %1029 = vst [vmem:[%s1027 + $0x4] sm:$0xf] 0
        %1030 = vst [vmem:[%s1027 + $0x8] sm:$0xf] 0
        %1031 = vst [vmem:[%s1027 + $0xc] sm:$0xf] 0
        %v1048 = vunpack.c.l.b16 %v1007
        %v1049 = vunpack.c.h.b16 %v1007
        %v1050 = vunpack.c.l.b16 %v1008
        %v1051 = vunpack.c.h.b16 %v1008
        %v1052 = vunpack.c.l.b16 %v1009
        %v1053 = vunpack.c.h.b16 %v1009
        %v1054 = vunpack.c.l.b16 %v1010
        %v1055 = vunpack.c.h.b16 %v1010
        %v1056 = vunpack.c.l.b16 %v1011
        %v1057 = vunpack.c.h.b16 %v1011
        %v1058 = vunpack.c.l.b16 %v1012
        %v1059 = vunpack.c.h.b16 %v1012
        %v1060 = vunpack.c.l.b16 %v1013
        %v1061 = vunpack.c.h.b16 %v1013
        %v1062 = vunpack.c.l.b16 %v1014
        %v1063 = vunpack.c.h.b16 %v1014
        %v1064 = vunpack.c.l.b16 %v1015
        %v1065 = vunpack.c.h.b16 %v1015
        %v1066 = vunpack.c.l.b16 %v1016
        %v1067 = vunpack.c.h.b16 %v1016
        %v1068 = vunpack.c.l.b16 %v1017
        %v1069 = vunpack.c.h.b16 %v1017
        %v1070 = vunpack.c.l.b16 %v1018
        %v1071 = vunpack.c.h.b16 %v1018
        %v1072 = vunpack.c.l.b16 %v1019
        %v1073 = vunpack.c.h.b16 %v1019
        %v1074 = vunpack.c.l.b16 %v1020
        %v1075 = vunpack.c.h.b16 %v1020
        %v1076 = vunpack.c.l.b16 %v1021
        %v1077 = vunpack.c.h.b16 %v1021
        %v1078 = vunpack.c.l.b16 %v1022
        %v1079 = vunpack.c.h.b16 %v1022
        %v1080 = vpack.c.b16 %v1048, %v1048
        %v1081 = vpack.c.b16 %v1049, %v1049
        %v1082 = vpack.c.b16 %v1050, %v1050
        %v1083 = vpack.c.b16 %v1051, %v1051
        %v1084 = vpack.c.b16 %v1052, %v1052
        %v1085 = vpack.c.b16 %v1053, %v1053
        %v1086 = vpack.c.b16 %v1054, %v1054
        %v1087 = vpack.c.b16 %v1055, %v1055
        %v1088 = vpack.c.b16 %v1056, %v1056
        %v1089 = vpack.c.b16 %v1057, %v1057
        %v1090 = vpack.c.b16 %v1058, %v1058
        %v1091 = vpack.c.b16 %v1059, %v1059
        %v1092 = vpack.c.b16 %v1060, %v1060
        %v1093 = vpack.c.b16 %v1061, %v1061
        %v1094 = vpack.c.b16 %v1062, %v1062
        %v1095 = vpack.c.b16 %v1063, %v1063
        %v1096 = vpack.c.b16 %v1064, %v1064
        %v1097 = vpack.c.b16 %v1065, %v1065
        %v1098 = vpack.c.b16 %v1066, %v1066
        %v1099 = vpack.c.b16 %v1067, %v1067
        %v1100 = vpack.c.b16 %v1068, %v1068
        %v1101 = vpack.c.b16 %v1069, %v1069
        %v1102 = vpack.c.b16 %v1070, %v1070
        %v1103 = vpack.c.b16 %v1071, %v1071
        %v1104 = vpack.c.b16 %v1072, %v1072
        %v1105 = vpack.c.b16 %v1073, %v1073
        %v1106 = vpack.c.b16 %v1074, %v1074
        %v1107 = vpack.c.b16 %v1075, %v1075
        %v1108 = vpack.c.b16 %v1076, %v1076
        %v1109 = vpack.c.b16 %v1077, %v1077
        %v1110 = vpack.c.b16 %v1078, %v1078
        %v1111 = vpack.c.b16 %v1079, %v1079
        %s1144 = scalar_lea.vmem [#allocation2], 16
        %1145 = vst [vmem:[%s1144] sm:$0xf] %v1080
        %1146 = vst [vmem:[%s1144 + $0x4] sm:$0xf] %v1081
        %1147 = vst [vmem:[%s1144 + $0x8] sm:$0xf] %v1082
        %1148 = vst [vmem:[%s1144 + $0xc] sm:$0xf] %v1083
        %1149 = vst [vmem:[%s1144 + $0x10] sm:$0xf] %v1084
        %1150 = vst [vmem:[%s1144 + $0x14] sm:$0xf] %v1085
        %1151 = vst [vmem:[%s1144 + $0x18] sm:$0xf] %v1086
        %1152 = vst [vmem:[%s1144 + $0x1c] sm:$0xf] %v1087
        %1153 = vst [vmem:[%s1144 + $0x20] sm:$0xf] %v1088
        %1154 = vst [vmem:[%s1144 + $0x24] sm:$0xf] %v1089
        %1155 = vst [vmem:[%s1144 + $0x28] sm:$0xf] %v1090
        %1156 = vst [vmem:[%s1144 + $0x2c] sm:$0xf] %v1091
        %1157 = vst [vmem:[%s1144 + $0x30] sm:$0xf] %v1092
        %1158 = vst [vmem:[%s1144 + $0x34] sm:$0xf] %v1093
        %1159 = vst [vmem:[%s1144 + $0x38] sm:$0xf] %v1094
        %1160 = vst [vmem:[%s1144 + $0x3c] sm:$0xf] %v1095
        %1161 = vst [vmem:[%s1144 + $0x40] sm:$0xf] %v1096
        %1162 = vst [vmem:[%s1144 + $0x44] sm:$0xf] %v1097
        %1163 = vst [vmem:[%s1144 + $0x48] sm:$0xf] %v1098
        %1164 = vst [vmem:[%s1144 + $0x4c] sm:$0xf] %v1099
        %1165 = vst [vmem:[%s1144 + $0x50] sm:$0xf] %v1100
        %1166 = vst [vmem:[%s1144 + $0x54] sm:$0xf] %v1101
        %1167 = vst [vmem:[%s1144 + $0x58] sm:$0xf] %v1102
        %1168 = vst [vmem:[%s1144 + $0x5c] sm:$0xf] %v1103
        %1169 = vst [vmem:[%s1144 + $0x60] sm:$0xf] %v1104
        %1170 = vst [vmem:[%s1144 + $0x64] sm:$0xf] %v1105
        %1171 = vst [vmem:[%s1144 + $0x68] sm:$0xf] %v1106
        %1172 = vst [vmem:[%s1144 + $0x6c] sm:$0xf] %v1107
        %1173 = vst [vmem:[%s1144 + $0x70] sm:$0xf] %v1108
        %1174 = vst [vmem:[%s1144 + $0x74] sm:$0xf] %v1109
        %1175 = vst [vmem:[%s1144 + $0x78] sm:$0xf] %v1110
        %1176 = vst [vmem:[%s1144 + $0x7c] sm:$0xf] %v1111
        %v1177 = vld [vmem:[#allocation2] sm:$0xf]
        %v1178 = vld [vmem:[#allocation2 + $0x4] sm:$0xf]
        %v1179 = vld [vmem:[#allocation2 + $0x8] sm:$0xf]
        %v1180 = vld [vmem:[#allocation2 + $0xc] sm:$0xf]
        %v1181 = vld [vmem:[#allocation2 + $0x10] sm:$0xf]
        %v1182 = vld [vmem:[#allocation2 + $0x14] sm:$0xf]
        %v1183 = vld [vmem:[#allocation2 + $0x18] sm:$0xf]
        %v1184 = vld [vmem:[#allocation2 + $0x1c] sm:$0xf]
        %v1185 = vld [vmem:[#allocation2 + $0x20] sm:$0xf]
        %v1186 = vld [vmem:[#allocation2 + $0x24] sm:$0xf]
        %v1187 = vld [vmem:[#allocation2 + $0x28] sm:$0xf]
        %v1188 = vld [vmem:[#allocation2 + $0x2c] sm:$0xf]
        %v1189 = vld [vmem:[#allocation2 + $0x30] sm:$0xf]
        %v1190 = vld [vmem:[#allocation2 + $0x34] sm:$0xf]
        %v1191 = vld [vmem:[#allocation2 + $0x38] sm:$0xf]
        %v1192 = vld [vmem:[#allocation2 + $0x3c] sm:$0xf]
        %v1193 = vld [vmem:[#allocation2 + $0x40] sm:$0xf]
        %v1194 = vld [vmem:[#allocation2 + $0x44] sm:$0xf]
        %v1195 = vld [vmem:[#allocation2 + $0x48] sm:$0xf]
        %v1196 = vld [vmem:[#allocation2 + $0x4c] sm:$0xf]
        %v1197 = vld [vmem:[#allocation2 + $0x50] sm:$0xf]
        %v1198 = vld [vmem:[#allocation2 + $0x54] sm:$0xf]
        %v1199 = vld [vmem:[#allocation2 + $0x58] sm:$0xf]
        %v1200 = vld [vmem:[#allocation2 + $0x5c] sm:$0xf]
        %v1201 = vld [vmem:[#allocation2 + $0x60] sm:$0xf]
        %v1202 = vld [vmem:[#allocation2 + $0x64] sm:$0xf]
        %v1203 = vld [vmem:[#allocation2 + $0x68] sm:$0xf]
        %v1204 = vld [vmem:[#allocation2 + $0x6c] sm:$0xf]
        %v1205 = vld [vmem:[#allocation2 + $0x70] sm:$0xf]
        %v1206 = vld [vmem:[#allocation2 + $0x74] sm:$0xf]
        %v1207 = vld [vmem:[#allocation2 + $0x78] sm:$0xf]
        %v1208 = vld [vmem:[#allocation2 + $0x7c] sm:$0xf]
        %v1209 = vld [vmem:[%s2] sm:$0xf]
        %v1210 = vld [vmem:[%s2 + $0x4] sm:$0xf]
        %v1211 = vld [vmem:[%s2 + $0x8] sm:$0xf]
        %v1212 = vld [vmem:[%s2 + $0xc] sm:$0xf]
        %v1213 = vld [vmem:[%s2 + $0x10] sm:$0xf]
        %v1214 = vld [vmem:[%s2 + $0x14] sm:$0xf]
        %v1215 = vld [vmem:[%s2 + $0x18] sm:$0xf]
        %v1216 = vld [vmem:[%s2 + $0x1c] sm:$0xf]
        %v1217 = vld [vmem:[%s2 + $0x20] sm:$0xf]
        %v1218 = vld [vmem:[%s2 + $0x24] sm:$0xf]
        %v1219 = vld [vmem:[%s2 + $0x28] sm:$0xf]
        %v1220 = vld [vmem:[%s2 + $0x2c] sm:$0xf]
        %v1221 = vld [vmem:[%s2 + $0x30] sm:$0xf]
        %v1222 = vld [vmem:[%s2 + $0x34] sm:$0xf]
        %v1223 = vld [vmem:[%s2 + $0x38] sm:$0xf]
        %v1224 = vld [vmem:[%s2 + $0x3c] sm:$0xf]
        %v1225 = vld [vmem:[%s1144] sm:$0xf]
        %v1226 = vld [vmem:[%s1144 + $0x4] sm:$0xf]
        %v1227 = vld [vmem:[%s1144 + $0x8] sm:$0xf]
        %v1228 = vld [vmem:[%s1144 + $0xc] sm:$0xf]
        %v1229 = vld [vmem:[%s1144 + $0x10] sm:$0xf]
        %v1230 = vld [vmem:[%s1144 + $0x14] sm:$0xf]
        %v1231 = vld [vmem:[%s1144 + $0x18] sm:$0xf]
        %v1232 = vld [vmem:[%s1144 + $0x1c] sm:$0xf]
        %v1233 = vld [vmem:[%s1144 + $0x20] sm:$0xf]
        %v1234 = vld [vmem:[%s1144 + $0x24] sm:$0xf]
        %v1235 = vld [vmem:[%s1144 + $0x28] sm:$0xf]
        %v1236 = vld [vmem:[%s1144 + $0x2c] sm:$0xf]
        %v1237 = vld [vmem:[%s1144 + $0x30] sm:$0xf]
        %v1238 = vld [vmem:[%s1144 + $0x34] sm:$0xf]
        %v1239 = vld [vmem:[%s1144 + $0x38] sm:$0xf]
        %v1240 = vld [vmem:[%s1144 + $0x3c] sm:$0xf]
        %v1241 = vld [vmem:[%s1144 + $0x40] sm:$0xf]
        %v1242 = vld [vmem:[%s1144 + $0x44] sm:$0xf]
        %v1243 = vld [vmem:[%s1144 + $0x48] sm:$0xf]
        %v1244 = vld [vmem:[%s1144 + $0x4c] sm:$0xf]
        %v1245 = vld [vmem:[%s1144 + $0x50] sm:$0xf]
        %v1246 = vld [vmem:[%s1144 + $0x54] sm:$0xf]
        %v1247 = vld [vmem:[%s1144 + $0x58] sm:$0xf]
        %v1248 = vld [vmem:[%s1144 + $0x5c] sm:$0xf]
        %v1249 = vld [vmem:[%s1144 + $0x60] sm:$0xf]
        %v1250 = vld [vmem:[%s1144 + $0x64] sm:$0xf]
        %v1251 = vld [vmem:[%s1144 + $0x68] sm:$0xf]
        %v1252 = vld [vmem:[%s1144 + $0x6c] sm:$0xf]
        %v1253 = vld [vmem:[%s1144 + $0x70] sm:$0xf]
        %v1254 = vld [vmem:[%s1144 + $0x74] sm:$0xf]
        %v1255 = vld [vmem:[%s1144 + $0x78] sm:$0xf]
        %v1256 = vld [vmem:[%s1144 + $0x7c] sm:$0xf]
        %s1257 = scalar_lea.vmem %s2, 64
        %v1258 = vld [vmem:[%s1257] sm:$0xf]
        %v1259 = vld [vmem:[%s1257 + $0x4] sm:$0xf]
        %v1260 = vld [vmem:[%s1257 + $0x8] sm:$0xf]
        %v1261 = vld [vmem:[%s1257 + $0xc] sm:$0xf]
        %v1262 = vld [vmem:[%s1257 + $0x10] sm:$0xf]
        %v1263 = vld [vmem:[%s1257 + $0x14] sm:$0xf]
        %v1264 = vld [vmem:[%s1257 + $0x18] sm:$0xf]
        %v1265 = vld [vmem:[%s1257 + $0x1c] sm:$0xf]
        %v1266 = vld [vmem:[%s1257 + $0x20] sm:$0xf]
        %v1267 = vld [vmem:[%s1257 + $0x24] sm:$0xf]
        %v1268 = vld [vmem:[%s1257 + $0x28] sm:$0xf]
        %v1269 = vld [vmem:[%s1257 + $0x2c] sm:$0xf]
        %v1270 = vld [vmem:[%s1257 + $0x30] sm:$0xf]
        %v1271 = vld [vmem:[%s1257 + $0x34] sm:$0xf]
        %v1272 = vld [vmem:[%s1257 + $0x38] sm:$0xf]
        %v1273 = vld [vmem:[%s1257 + $0x3c] sm:$0xf]
        %v1306 = vunpack.c.l.b16 %v1225
        %v1307 = vunpack.c.l.b16 %v1226
        %v1308 = vunpack.c.l.b16 %v1227
        %v1309 = vunpack.c.l.b16 %v1228
        %v1310 = vunpack.c.l.b16 %v1229
        %v1311 = vunpack.c.l.b16 %v1230
        %v1312 = vunpack.c.l.b16 %v1231
        %v1313 = vunpack.c.l.b16 %v1232
        %v1314 = vunpack.c.l.b16 %v1233
        %v1315 = vunpack.c.l.b16 %v1234
        %v1316 = vunpack.c.l.b16 %v1235
        %v1317 = vunpack.c.l.b16 %v1236
        %v1318 = vunpack.c.l.b16 %v1237
        %v1319 = vunpack.c.l.b16 %v1238
        %v1320 = vunpack.c.l.b16 %v1239
        %v1321 = vunpack.c.l.b16 %v1240
        %v1322 = vunpack.c.l.b16 %v1241
        %v1323 = vunpack.c.l.b16 %v1242
        %v1324 = vunpack.c.l.b16 %v1243
        %v1325 = vunpack.c.l.b16 %v1244
        %v1326 = vunpack.c.l.b16 %v1245
        %v1327 = vunpack.c.l.b16 %v1246
        %v1328 = vunpack.c.l.b16 %v1247
        %v1329 = vunpack.c.l.b16 %v1248
        %v1330 = vunpack.c.l.b16 %v1249
        %v1331 = vunpack.c.l.b16 %v1250
        %v1332 = vunpack.c.l.b16 %v1251
        %v1333 = vunpack.c.l.b16 %v1252
        %v1334 = vunpack.c.l.b16 %v1253
        %v1335 = vunpack.c.l.b16 %v1254
        %v1336 = vunpack.c.l.b16 %v1255
        %v1337 = vunpack.c.l.b16 %v1256
        %v1338 = vpack.c.b16 %v1307, %v1306
        %v1339 = vpack.c.b16 %v1309, %v1308
        %v1340 = vpack.c.b16 %v1311, %v1310
        %v1341 = vpack.c.b16 %v1313, %v1312
        %v1342 = vpack.c.b16 %v1315, %v1314
        %v1343 = vpack.c.b16 %v1317, %v1316
        %v1344 = vpack.c.b16 %v1319, %v1318
        %v1345 = vpack.c.b16 %v1321, %v1320
        %v1346 = vpack.c.b16 %v1323, %v1322
        %v1347 = vpack.c.b16 %v1325, %v1324
        %v1348 = vpack.c.b16 %v1327, %v1326
        %v1349 = vpack.c.b16 %v1329, %v1328
        %v1350 = vpack.c.b16 %v1331, %v1330
        %v1351 = vpack.c.b16 %v1333, %v1332
        %v1352 = vpack.c.b16 %v1335, %v1334
        %v1353 = vpack.c.b16 %v1337, %v1336
        %v1386 = vunpack.c.l.b16 %v1258
        %v1387 = vunpack.c.l.b16 %v1259
        %v1388 = vunpack.c.l.b16 %v1260
        %v1389 = vunpack.c.l.b16 %v1261
        %v1390 = vunpack.c.l.b16 %v1262
        %v1391 = vunpack.c.l.b16 %v1263
        %v1392 = vunpack.c.l.b16 %v1264
        %v1393 = vunpack.c.l.b16 %v1265
        %v1394 = vunpack.c.l.b16 %v1266
        %v1395 = vunpack.c.l.b16 %v1267
        %v1396 = vunpack.c.l.b16 %v1268
        %v1397 = vunpack.c.l.b16 %v1269
        %v1398 = vunpack.c.l.b16 %v1270
        %v1399 = vunpack.c.l.b16 %v1271
        %v1400 = vunpack.c.l.b16 %v1272
        %v1401 = vunpack.c.l.b16 %v1273
        %v1402 = vpack.c.b16 %v1387, %v1386
        %v1403 = vpack.c.b16 %v1389, %v1388
        %v1404 = vpack.c.b16 %v1391, %v1390
        %v1405 = vpack.c.b16 %v1393, %v1392
        %v1406 = vpack.c.b16 %v1395, %v1394
        %v1407 = vpack.c.b16 %v1397, %v1396
        %v1408 = vpack.c.b16 %v1399, %v1398
        %v1409 = vpack.c.b16 %v1401, %v1400
        %1418 = vmatpush.bf16.msra.mxu0 %v1409
        %1419 = vmatpush.bf16.msra.mxu0 %v1408
        %1420 = vmatpush.bf16.msra.mxu0 %v1407
        %1421 = vmatpush.bf16.msra.mxu0 %v1406
        %1422 = vmatpush.bf16.msra.mxu0 %v1405
        %1423 = vmatpush.bf16.msra.mxu0 %v1404
        %1424 = vmatpush.bf16.msra.mxu0 %v1403
        %1425 = vmatpush.bf16.msra.mxu0 %v1402
        %1426 = vmatmul.bf16.gmra.mxu0 %v1338
        %v1427 = vpop.f32.mrf.mxu0
        %v1428 = vadd.f32 0.0, %v1427
        %v1429 = vpop.f32.mrf.mxu0
        %v1430 = vadd.f32 0.0, %v1429
        %1431 = vmatmul.bf16.gmra.mxu0 %v1339
        %v1432 = vpop.f32.mrf.mxu0
        %v1433 = vadd.f32 0.0, %v1432
        %v1434 = vpop.f32.mrf.mxu0
        %v1435 = vadd.f32 0.0, %v1434
        %1436 = vmatmul.bf16.gmra.mxu0 %v1340
        %v1437 = vpop.f32.mrf.mxu0
        %v1438 = vadd.f32 0.0, %v1437
        %v1439 = vpop.f32.mrf.mxu0
        %v1440 = vadd.f32 0.0, %v1439
        %1441 = vmatmul.bf16.gmra.mxu0 %v1341
        %v1442 = vpop.f32.mrf.mxu0
        %v1443 = vadd.f32 0.0, %v1442
        %v1444 = vpop.f32.mrf.mxu0
        %v1445 = vadd.f32 0.0, %v1444
        %1446 = vmatmul.bf16.gmra.mxu0 %v1342
        %v1447 = vpop.f32.mrf.mxu0
        %v1448 = vadd.f32 0.0, %v1447
        %v1449 = vpop.f32.mrf.mxu0
        %v1450 = vadd.f32 0.0, %v1449
        %1451 = vmatmul.bf16.gmra.mxu0 %v1343
        %v1452 = vpop.f32.mrf.mxu0
        %v1453 = vadd.f32 0.0, %v1452
        %v1454 = vpop.f32.mrf.mxu0
        %v1455 = vadd.f32 0.0, %v1454
        %1456 = vmatmul.bf16.gmra.mxu0 %v1344
        %v1457 = vpop.f32.mrf.mxu0
        %v1458 = vadd.f32 0.0, %v1457
        %v1459 = vpop.f32.mrf.mxu0
        %v1460 = vadd.f32 0.0, %v1459
        %1461 = vmatmul.bf16.gmra.mxu0 %v1345
        %v1462 = vpop.f32.mrf.mxu0
        %v1463 = vadd.f32 0.0, %v1462
        %v1464 = vpop.f32.mrf.mxu0
        %v1465 = vadd.f32 0.0, %v1464
        %1466 = vmatmul.bf16.gmra.mxu0 %v1346
        %v1467 = vpop.f32.mrf.mxu0
        %v1468 = vadd.f32 0.0, %v1467
        %v1469 = vpop.f32.mrf.mxu0
        %v1470 = vadd.f32 0.0, %v1469
        %1471 = vmatmul.bf16.gmra.mxu0 %v1347
        %v1472 = vpop.f32.mrf.mxu0
        %v1473 = vadd.f32 0.0, %v1472
        %v1474 = vpop.f32.mrf.mxu0
        %v1475 = vadd.f32 0.0, %v1474
        %1476 = vmatmul.bf16.gmra.mxu0 %v1348
        %v1477 = vpop.f32.mrf.mxu0
        %v1478 = vadd.f32 0.0, %v1477
        %v1479 = vpop.f32.mrf.mxu0
        %v1480 = vadd.f32 0.0, %v1479
        %1481 = vmatmul.bf16.gmra.mxu0 %v1349
        %v1482 = vpop.f32.mrf.mxu0
        %v1483 = vadd.f32 0.0, %v1482
        %v1484 = vpop.f32.mrf.mxu0
        %v1485 = vadd.f32 0.0, %v1484
        %1486 = vmatmul.bf16.gmra.mxu0 %v1350
        %v1487 = vpop.f32.mrf.mxu0
        %v1488 = vadd.f32 0.0, %v1487
        %v1489 = vpop.f32.mrf.mxu0
        %v1490 = vadd.f32 0.0, %v1489
        %1491 = vmatmul.bf16.gmra.mxu0 %v1351
        %v1492 = vpop.f32.mrf.mxu0
        %v1493 = vadd.f32 0.0, %v1492
        %v1494 = vpop.f32.mrf.mxu0
        %v1495 = vadd.f32 0.0, %v1494
        %1496 = vmatmul.bf16.gmra.mxu0 %v1352
        %v1497 = vpop.f32.mrf.mxu0
        %v1498 = vadd.f32 0.0, %v1497
        %v1499 = vpop.f32.mrf.mxu0
        %v1500 = vadd.f32 0.0, %v1499
        %1501 = vmatmul.bf16.gmra.mxu0 %v1353
        %v1502 = vpop.f32.mrf.mxu0
        %v1503 = vadd.f32 0.0, %v1502
        %v1504 = vpop.f32.mrf.mxu0
        %v1505 = vadd.f32 0.0, %v1504
        %1506 = vdwg.mxu0
        %v1539 = vunpack.c.l.b16 %v1177
        %v1540 = vunpack.c.l.b16 %v1178
        %v1541 = vunpack.c.l.b16 %v1179
        %v1542 = vunpack.c.l.b16 %v1180
        %v1543 = vunpack.c.l.b16 %v1181
        %v1544 = vunpack.c.l.b16 %v1182
        %v1545 = vunpack.c.l.b16 %v1183
        %v1546 = vunpack.c.l.b16 %v1184
        %v1547 = vunpack.c.l.b16 %v1185
        %v1548 = vunpack.c.l.b16 %v1186
        %v1549 = vunpack.c.l.b16 %v1187
        %v1550 = vunpack.c.l.b16 %v1188
        %v1551 = vunpack.c.l.b16 %v1189
        %v1552 = vunpack.c.l.b16 %v1190
        %v1553 = vunpack.c.l.b16 %v1191
        %v1554 = vunpack.c.l.b16 %v1192
        %v1555 = vunpack.c.l.b16 %v1193
        %v1556 = vunpack.c.l.b16 %v1194
        %v1557 = vunpack.c.l.b16 %v1195
        %v1558 = vunpack.c.l.b16 %v1196
        %v1559 = vunpack.c.l.b16 %v1197
        %v1560 = vunpack.c.l.b16 %v1198
        %v1561 = vunpack.c.l.b16 %v1199
        %v1562 = vunpack.c.l.b16 %v1200
        %v1563 = vunpack.c.l.b16 %v1201
        %v1564 = vunpack.c.l.b16 %v1202
        %v1565 = vunpack.c.l.b16 %v1203
        %v1566 = vunpack.c.l.b16 %v1204
        %v1567 = vunpack.c.l.b16 %v1205
        %v1568 = vunpack.c.l.b16 %v1206
        %v1569 = vunpack.c.l.b16 %v1207
        %v1570 = vunpack.c.l.b16 %v1208
        %v1571 = vpack.c.b16 %v1540, %v1539
        %v1572 = vpack.c.b16 %v1542, %v1541
        %v1573 = vpack.c.b16 %v1544, %v1543
        %v1574 = vpack.c.b16 %v1546, %v1545
        %v1575 = vpack.c.b16 %v1548, %v1547
        %v1576 = vpack.c.b16 %v1550, %v1549
        %v1577 = vpack.c.b16 %v1552, %v1551
        %v1578 = vpack.c.b16 %v1554, %v1553
        %v1579 = vpack.c.b16 %v1556, %v1555
        %v1580 = vpack.c.b16 %v1558, %v1557
        %v1581 = vpack.c.b16 %v1560, %v1559
        %v1582 = vpack.c.b16 %v1562, %v1561
        %v1583 = vpack.c.b16 %v1564, %v1563
        %v1584 = vpack.c.b16 %v1566, %v1565
        %v1585 = vpack.c.b16 %v1568, %v1567
        %v1586 = vpack.c.b16 %v1570, %v1569
        %v1619 = vunpack.c.l.b16 %v1209
        %v1620 = vunpack.c.l.b16 %v1210
        %v1621 = vunpack.c.l.b16 %v1211
        %v1622 = vunpack.c.l.b16 %v1212
        %v1623 = vunpack.c.l.b16 %v1213
        %v1624 = vunpack.c.l.b16 %v1214
        %v1625 = vunpack.c.l.b16 %v1215
        %v1626 = vunpack.c.l.b16 %v1216
        %v1627 = vunpack.c.l.b16 %v1217
        %v1628 = vunpack.c.l.b16 %v1218
        %v1629 = vunpack.c.l.b16 %v1219
        %v1630 = vunpack.c.l.b16 %v1220
        %v1631 = vunpack.c.l.b16 %v1221
        %v1632 = vunpack.c.l.b16 %v1222
        %v1633 = vunpack.c.l.b16 %v1223
        %v1634 = vunpack.c.l.b16 %v1224
        %v1635 = vpack.c.b16 %v1620, %v1619
        %v1636 = vpack.c.b16 %v1622, %v1621
        %v1637 = vpack.c.b16 %v1624, %v1623
        %v1638 = vpack.c.b16 %v1626, %v1625
        %v1639 = vpack.c.b16 %v1628, %v1627
        %v1640 = vpack.c.b16 %v1630, %v1629
        %v1641 = vpack.c.b16 %v1632, %v1631
        %v1642 = vpack.c.b16 %v1634, %v1633
        %1651 = vmatpush.bf16.msra.mxu0 %v1642
        %1652 = vmatpush.bf16.msra.mxu0 %v1641
        %1653 = vmatpush.bf16.msra.mxu0 %v1640
        %1654 = vmatpush.bf16.msra.mxu0 %v1639
        %1655 = vmatpush.bf16.msra.mxu0 %v1638
        %1656 = vmatpush.bf16.msra.mxu0 %v1637
        %1657 = vmatpush.bf16.msra.mxu0 %v1636
        %1658 = vmatpush.bf16.msra.mxu0 %v1635
        %1659 = vmatmul.bf16.gmra.mxu0 %v1571
        %v1660 = vpop.f32.mrf.mxu0
        %v1661 = vadd.f32 %v1428, %v1660
        %v1662 = vpop.f32.mrf.mxu0
        %v1663 = vadd.f32 %v1430, %v1662
        %1664 = vmatmul.bf16.gmra.mxu0 %v1572
        %v1665 = vpop.f32.mrf.mxu0
        %v1666 = vadd.f32 %v1433, %v1665
        %v1667 = vpop.f32.mrf.mxu0
        %v1668 = vadd.f32 %v1435, %v1667
        %1669 = vmatmul.bf16.gmra.mxu0 %v1573
        %v1670 = vpop.f32.mrf.mxu0
        %v1671 = vadd.f32 %v1438, %v1670
        %v1672 = vpop.f32.mrf.mxu0
        %v1673 = vadd.f32 %v1440, %v1672
        %1674 = vmatmul.bf16.gmra.mxu0 %v1574
        %v1675 = vpop.f32.mrf.mxu0
        %v1676 = vadd.f32 %v1443, %v1675
        %v1677 = vpop.f32.mrf.mxu0
        %v1678 = vadd.f32 %v1445, %v1677
        %1679 = vmatmul.bf16.gmra.mxu0 %v1575
        %v1680 = vpop.f32.mrf.mxu0
        %v1681 = vadd.f32 %v1448, %v1680
        %v1682 = vpop.f32.mrf.mxu0
        %v1683 = vadd.f32 %v1450, %v1682
        %1684 = vmatmul.bf16.gmra.mxu0 %v1576
        %v1685 = vpop.f32.mrf.mxu0
        %v1686 = vadd.f32 %v1453, %v1685
        %v1687 = vpop.f32.mrf.mxu0
        %v1688 = vadd.f32 %v1455, %v1687
        %1689 = vmatmul.bf16.gmra.mxu0 %v1577
        %v1690 = vpop.f32.mrf.mxu0
        %v1691 = vadd.f32 %v1458, %v1690
        %v1692 = vpop.f32.mrf.mxu0
        %v1693 = vadd.f32 %v1460, %v1692
        %1694 = vmatmul.bf16.gmra.mxu0 %v1578
        %v1695 = vpop.f32.mrf.mxu0
        %v1696 = vadd.f32 %v1463, %v1695
        %v1697 = vpop.f32.mrf.mxu0
        %v1698 = vadd.f32 %v1465, %v1697
        %1699 = vmatmul.bf16.gmra.mxu0 %v1579
        %v1700 = vpop.f32.mrf.mxu0
        %v1701 = vadd.f32 %v1468, %v1700
        %v1702 = vpop.f32.mrf.mxu0
        %v1703 = vadd.f32 %v1470, %v1702
        %1704 = vmatmul.bf16.gmra.mxu0 %v1580
        %v1705 = vpop.f32.mrf.mxu0
        %v1706 = vadd.f32 %v1473, %v1705
        %v1707 = vpop.f32.mrf.mxu0
        %v1708 = vadd.f32 %v1475, %v1707
        %1709 = vmatmul.bf16.gmra.mxu0 %v1581
        %v1710 = vpop.f32.mrf.mxu0
        %v1711 = vadd.f32 %v1478, %v1710
        %v1712 = vpop.f32.mrf.mxu0
        %v1713 = vadd.f32 %v1480, %v1712
        %1714 = vmatmul.bf16.gmra.mxu0 %v1582
        %v1715 = vpop.f32.mrf.mxu0
        %v1716 = vadd.f32 %v1483, %v1715
        %v1717 = vpop.f32.mrf.mxu0
        %v1718 = vadd.f32 %v1485, %v1717
        %1719 = vmatmul.bf16.gmra.mxu0 %v1583
        %v1720 = vpop.f32.mrf.mxu0
        %v1721 = vadd.f32 %v1488, %v1720
        %v1722 = vpop.f32.mrf.mxu0
        %v1723 = vadd.f32 %v1490, %v1722
        %1724 = vmatmul.bf16.gmra.mxu0 %v1584
        %v1725 = vpop.f32.mrf.mxu0
        %v1726 = vadd.f32 %v1493, %v1725
        %v1727 = vpop.f32.mrf.mxu0
        %v1728 = vadd.f32 %v1495, %v1727
        %1729 = vmatmul.bf16.gmra.mxu0 %v1585
        %v1730 = vpop.f32.mrf.mxu0
        %v1731 = vadd.f32 %v1498, %v1730
        %v1732 = vpop.f32.mrf.mxu0
        %v1733 = vadd.f32 %v1500, %v1732
        %1734 = vmatmul.bf16.gmra.mxu0 %v1586
        %v1735 = vpop.f32.mrf.mxu0
        %v1736 = vadd.f32 %v1503, %v1735
        %v1737 = vpop.f32.mrf.mxu0
        %v1738 = vadd.f32 %v1505, %v1737
        %1739 = vdwg.mxu0
        %s1740 = scalar_lea.vmem [#allocation2], 32
        %v1741 = vld [vmem:[%s1740] sm:$0xf]
        %v1742 = vld [vmem:[%s1740 + $0x4] sm:$0xf]
        %v1743 = vld [vmem:[%s1740 + $0x8] sm:$0xf]
        %v1744 = vld [vmem:[%s1740 + $0xc] sm:$0xf]
        %v1745 = vld [vmem:[%s1740 + $0x10] sm:$0xf]
        %v1746 = vld [vmem:[%s1740 + $0x14] sm:$0xf]
        %v1747 = vld [vmem:[%s1740 + $0x18] sm:$0xf]
        %v1748 = vld [vmem:[%s1740 + $0x1c] sm:$0xf]
        %v1749 = vld [vmem:[%s1740 + $0x20] sm:$0xf]
        %v1750 = vld [vmem:[%s1740 + $0x24] sm:$0xf]
        %v1751 = vld [vmem:[%s1740 + $0x28] sm:$0xf]
        %v1752 = vld [vmem:[%s1740 + $0x2c] sm:$0xf]
        %v1753 = vld [vmem:[%s1740 + $0x30] sm:$0xf]
        %v1754 = vld [vmem:[%s1740 + $0x34] sm:$0xf]
        %v1755 = vld [vmem:[%s1740 + $0x38] sm:$0xf]
        %v1756 = vld [vmem:[%s1740 + $0x3c] sm:$0xf]
        %v1757 = vld [vmem:[%s1740 + $0x40] sm:$0xf]
        %v1758 = vld [vmem:[%s1740 + $0x44] sm:$0xf]
        %v1759 = vld [vmem:[%s1740 + $0x48] sm:$0xf]
        %v1760 = vld [vmem:[%s1740 + $0x4c] sm:$0xf]
        %v1761 = vld [vmem:[%s1740 + $0x50] sm:$0xf]
        %v1762 = vld [vmem:[%s1740 + $0x54] sm:$0xf]
        %v1763 = vld [vmem:[%s1740 + $0x58] sm:$0xf]
        %v1764 = vld [vmem:[%s1740 + $0x5c] sm:$0xf]
        %v1765 = vld [vmem:[%s1740 + $0x60] sm:$0xf]
        %v1766 = vld [vmem:[%s1740 + $0x64] sm:$0xf]
        %v1767 = vld [vmem:[%s1740 + $0x68] sm:$0xf]
        %v1768 = vld [vmem:[%s1740 + $0x6c] sm:$0xf]
        %v1769 = vld [vmem:[%s1740 + $0x70] sm:$0xf]
        %v1770 = vld [vmem:[%s1740 + $0x74] sm:$0xf]
        %v1771 = vld [vmem:[%s1740 + $0x78] sm:$0xf]
        %v1772 = vld [vmem:[%s1740 + $0x7c] sm:$0xf]
        %s1773 = scalar_lea.vmem %s2, 128
        %v1774 = vld [vmem:[%s1773] sm:$0xf]
        %v1775 = vld [vmem:[%s1773 + $0x4] sm:$0xf]
        %v1776 = vld [vmem:[%s1773 + $0x8] sm:$0xf]
        %v1777 = vld [vmem:[%s1773 + $0xc] sm:$0xf]
        %v1778 = vld [vmem:[%s1773 + $0x10] sm:$0xf]
        %v1779 = vld [vmem:[%s1773 + $0x14] sm:$0xf]
        %v1780 = vld [vmem:[%s1773 + $0x18] sm:$0xf]
        %v1781 = vld [vmem:[%s1773 + $0x1c] sm:$0xf]
        %v1782 = vld [vmem:[%s1773 + $0x20] sm:$0xf]
        %v1783 = vld [vmem:[%s1773 + $0x24] sm:$0xf]
        %v1784 = vld [vmem:[%s1773 + $0x28] sm:$0xf]
        %v1785 = vld [vmem:[%s1773 + $0x2c] sm:$0xf]
        %v1786 = vld [vmem:[%s1773 + $0x30] sm:$0xf]
        %v1787 = vld [vmem:[%s1773 + $0x34] sm:$0xf]
        %v1788 = vld [vmem:[%s1773 + $0x38] sm:$0xf]
        %v1789 = vld [vmem:[%s1773 + $0x3c] sm:$0xf]
        %v1822 = vunpack.c.l.b16 %v1741
        %v1823 = vunpack.c.l.b16 %v1742
        %v1824 = vunpack.c.l.b16 %v1743
        %v1825 = vunpack.c.l.b16 %v1744
        %v1826 = vunpack.c.l.b16 %v1745
        %v1827 = vunpack.c.l.b16 %v1746
        %v1828 = vunpack.c.l.b16 %v1747
        %v1829 = vunpack.c.l.b16 %v1748
        %v1830 = vunpack.c.l.b16 %v1749
        %v1831 = vunpack.c.l.b16 %v1750
        %v1832 = vunpack.c.l.b16 %v1751
        %v1833 = vunpack.c.l.b16 %v1752
        %v1834 = vunpack.c.l.b16 %v1753
        %v1835 = vunpack.c.l.b16 %v1754
        %v1836 = vunpack.c.l.b16 %v1755
        %v1837 = vunpack.c.l.b16 %v1756
        %v1838 = vunpack.c.l.b16 %v1757
        %v1839 = vunpack.c.l.b16 %v1758
        %v1840 = vunpack.c.l.b16 %v1759
        %v1841 = vunpack.c.l.b16 %v1760
        %v1842 = vunpack.c.l.b16 %v1761
        %v1843 = vunpack.c.l.b16 %v1762
        %v1844 = vunpack.c.l.b16 %v1763
        %v1845 = vunpack.c.l.b16 %v1764
        %v1846 = vunpack.c.l.b16 %v1765
        %v1847 = vunpack.c.l.b16 %v1766
        %v1848 = vunpack.c.l.b16 %v1767
        %v1849 = vunpack.c.l.b16 %v1768
        %v1850 = vunpack.c.l.b16 %v1769
        %v1851 = vunpack.c.l.b16 %v1770
        %v1852 = vunpack.c.l.b16 %v1771
        %v1853 = vunpack.c.l.b16 %v1772
        %v1854 = vpack.c.b16 %v1823, %v1822
        %v1855 = vpack.c.b16 %v1825, %v1824
        %v1856 = vpack.c.b16 %v1827, %v1826
        %v1857 = vpack.c.b16 %v1829, %v1828
        %v1858 = vpack.c.b16 %v1831, %v1830
        %v1859 = vpack.c.b16 %v1833, %v1832
        %v1860 = vpack.c.b16 %v1835, %v1834
        %v1861 = vpack.c.b16 %v1837, %v1836
        %v1862 = vpack.c.b16 %v1839, %v1838
        %v1863 = vpack.c.b16 %v1841, %v1840
        %v1864 = vpack.c.b16 %v1843, %v1842
        %v1865 = vpack.c.b16 %v1845, %v1844
        %v1866 = vpack.c.b16 %v1847, %v1846
        %v1867 = vpack.c.b16 %v1849, %v1848
        %v1868 = vpack.c.b16 %v1851, %v1850
        %v1869 = vpack.c.b16 %v1853, %v1852
        %v1902 = vunpack.c.l.b16 %v1774
        %v1903 = vunpack.c.l.b16 %v1775
        %v1904 = vunpack.c.l.b16 %v1776
        %v1905 = vunpack.c.l.b16 %v1777
        %v1906 = vunpack.c.l.b16 %v1778
        %v1907 = vunpack.c.l.b16 %v1779
        %v1908 = vunpack.c.l.b16 %v1780
        %v1909 = vunpack.c.l.b16 %v1781
        %v1910 = vunpack.c.l.b16 %v1782
        %v1911 = vunpack.c.l.b16 %v1783
        %v1912 = vunpack.c.l.b16 %v1784
        %v1913 = vunpack.c.l.b16 %v1785
        %v1914 = vunpack.c.l.b16 %v1786
        %v1915 = vunpack.c.l.b16 %v1787
        %v1916 = vunpack.c.l.b16 %v1788
        %v1917 = vunpack.c.l.b16 %v1789
        %v1918 = vpack.c.b16 %v1903, %v1902
        %v1919 = vpack.c.b16 %v1905, %v1904
        %v1920 = vpack.c.b16 %v1907, %v1906
        %v1921 = vpack.c.b16 %v1909, %v1908
        %v1922 = vpack.c.b16 %v1911, %v1910
        %v1923 = vpack.c.b16 %v1913, %v1912
        %v1924 = vpack.c.b16 %v1915, %v1914
        %v1925 = vpack.c.b16 %v1917, %v1916
        %1934 = vmatpush.bf16.msra.mxu0 %v1925
        %1935 = vmatpush.bf16.msra.mxu0 %v1924
        %1936 = vmatpush.bf16.msra.mxu0 %v1923
        %1937 = vmatpush.bf16.msra.mxu0 %v1922
        %1938 = vmatpush.bf16.msra.mxu0 %v1921
        %1939 = vmatpush.bf16.msra.mxu0 %v1920
        %1940 = vmatpush.bf16.msra.mxu0 %v1919
        %1941 = vmatpush.bf16.msra.mxu0 %v1918
        %1942 = vmatmul.bf16.gmra.mxu0 %v1854
        %v1943 = vpop.f32.mrf.mxu0
        %v1944 = vadd.f32 0.0, %v1943
        %v1945 = vpop.f32.mrf.mxu0
        %v1946 = vadd.f32 0.0, %v1945
        %1947 = vmatmul.bf16.gmra.mxu0 %v1855
        %v1948 = vpop.f32.mrf.mxu0
        %v1949 = vadd.f32 0.0, %v1948
        %v1950 = vpop.f32.mrf.mxu0
        %v1951 = vadd.f32 0.0, %v1950
        %1952 = vmatmul.bf16.gmra.mxu0 %v1856
        %v1953 = vpop.f32.mrf.mxu0
        %v1954 = vadd.f32 0.0, %v1953
        %v1955 = vpop.f32.mrf.mxu0
        %v1956 = vadd.f32 0.0, %v1955
        %1957 = vmatmul.bf16.gmra.mxu0 %v1857
        %v1958 = vpop.f32.mrf.mxu0
        %v1959 = vadd.f32 0.0, %v1958
        %v1960 = vpop.f32.mrf.mxu0
        %v1961 = vadd.f32 0.0, %v1960
        %1962 = vmatmul.bf16.gmra.mxu0 %v1858
        %v1963 = vpop.f32.mrf.mxu0
        %v1964 = vadd.f32 0.0, %v1963
        %v1965 = vpop.f32.mrf.mxu0
        %v1966 = vadd.f32 0.0, %v1965
        %1967 = vmatmul.bf16.gmra.mxu0 %v1859
        %v1968 = vpop.f32.mrf.mxu0
        %v1969 = vadd.f32 0.0, %v1968
        %v1970 = vpop.f32.mrf.mxu0
        %v1971 = vadd.f32 0.0, %v1970
        %1972 = vmatmul.bf16.gmra.mxu0 %v1860
        %v1973 = vpop.f32.mrf.mxu0
        %v1974 = vadd.f32 0.0, %v1973
        %v1975 = vpop.f32.mrf.mxu0
        %v1976 = vadd.f32 0.0, %v1975
        %1977 = vmatmul.bf16.gmra.mxu0 %v1861
        %v1978 = vpop.f32.mrf.mxu0
        %v1979 = vadd.f32 0.0, %v1978
        %v1980 = vpop.f32.mrf.mxu0
        %v1981 = vadd.f32 0.0, %v1980
        %1982 = vmatmul.bf16.gmra.mxu0 %v1862
        %v1983 = vpop.f32.mrf.mxu0
        %v1984 = vadd.f32 0.0, %v1983
        %v1985 = vpop.f32.mrf.mxu0
        %v1986 = vadd.f32 0.0, %v1985
        %1987 = vmatmul.bf16.gmra.mxu0 %v1863
        %v1988 = vpop.f32.mrf.mxu0
        %v1989 = vadd.f32 0.0, %v1988
        %v1990 = vpop.f32.mrf.mxu0
        %v1991 = vadd.f32 0.0, %v1990
        %1992 = vmatmul.bf16.gmra.mxu0 %v1864
        %v1993 = vpop.f32.mrf.mxu0
        %v1994 = vadd.f32 0.0, %v1993
        %v1995 = vpop.f32.mrf.mxu0
        %v1996 = vadd.f32 0.0, %v1995
        %1997 = vmatmul.bf16.gmra.mxu0 %v1865
        %v1998 = vpop.f32.mrf.mxu0
        %v1999 = vadd.f32 0.0, %v1998
        %v2000 = vpop.f32.mrf.mxu0
        %v2001 = vadd.f32 0.0, %v2000
        %2002 = vmatmul.bf16.gmra.mxu0 %v1866
        %v2003 = vpop.f32.mrf.mxu0
        %v2004 = vadd.f32 0.0, %v2003
        %v2005 = vpop.f32.mrf.mxu0
        %v2006 = vadd.f32 0.0, %v2005
        %2007 = vmatmul.bf16.gmra.mxu0 %v1867
        %v2008 = vpop.f32.mrf.mxu0
        %v2009 = vadd.f32 0.0, %v2008
        %v2010 = vpop.f32.mrf.mxu0
        %v2011 = vadd.f32 0.0, %v2010
        %2012 = vmatmul.bf16.gmra.mxu0 %v1868
        %v2013 = vpop.f32.mrf.mxu0
        %v2014 = vadd.f32 0.0, %v2013
        %v2015 = vpop.f32.mrf.mxu0
        %v2016 = vadd.f32 0.0, %v2015
        %2017 = vmatmul.bf16.gmra.mxu0 %v1869
        %v2018 = vpop.f32.mrf.mxu0
        %v2019 = vadd.f32 0.0, %v2018
        %v2020 = vpop.f32.mrf.mxu0
        %v2021 = vadd.f32 0.0, %v2020
        %2022 = vdwg.mxu0
        %v2023 = vadd.f32 %v1661, %v1944
        %v2024 = vadd.f32 %v1663, %v1946
        %v2025 = vadd.f32 %v1666, %v1949
        %v2026 = vadd.f32 %v1668, %v1951
        %v2027 = vadd.f32 %v1671, %v1954
        %v2028 = vadd.f32 %v1673, %v1956
        %v2029 = vadd.f32 %v1676, %v1959
        %v2030 = vadd.f32 %v1678, %v1961
        %v2031 = vadd.f32 %v1681, %v1964
        %v2032 = vadd.f32 %v1683, %v1966
        %v2033 = vadd.f32 %v1686, %v1969
        %v2034 = vadd.f32 %v1688, %v1971
        %v2035 = vadd.f32 %v1691, %v1974
        %v2036 = vadd.f32 %v1693, %v1976
        %v2037 = vadd.f32 %v1696, %v1979
        %v2038 = vadd.f32 %v1698, %v1981
        %v2039 = vadd.f32 %v1701, %v1984
        %v2040 = vadd.f32 %v1703, %v1986
        %v2041 = vadd.f32 %v1706, %v1989
        %v2042 = vadd.f32 %v1708, %v1991
        %v2043 = vadd.f32 %v1711, %v1994
        %v2044 = vadd.f32 %v1713, %v1996
        %v2045 = vadd.f32 %v1716, %v1999
        %v2046 = vadd.f32 %v1718, %v2001
        %v2047 = vadd.f32 %v1721, %v2004
        %v2048 = vadd.f32 %v1723, %v2006
        %v2049 = vadd.f32 %v1726, %v2009
        %v2050 = vadd.f32 %v1728, %v2011
        %v2051 = vadd.f32 %v1731, %v2014
        %v2052 = vadd.f32 %v1733, %v2016
        %v2053 = vadd.f32 %v1736, %v2019
        %v2054 = vadd.f32 %v1738, %v2021
        %v2055 = vld [vmem:[%s5] sm:$0x1]
        %v2057 = vperm.slane %v2055, 0
        %v2059 = vadd.f32 %v2023, %v2057
        %v2060 = vadd.f32 %v2024, %v2057
        %v2061 = vadd.f32 %v2025, %v2057
        %v2062 = vadd.f32 %v2026, %v2057
        %v2063 = vadd.f32 %v2027, %v2057
        %v2064 = vadd.f32 %v2028, %v2057
        %v2065 = vadd.f32 %v2029, %v2057
        %v2066 = vadd.f32 %v2030, %v2057
        %v2067 = vadd.f32 %v2031, %v2057
        %v2068 = vadd.f32 %v2032, %v2057
        %v2069 = vadd.f32 %v2033, %v2057
        %v2070 = vadd.f32 %v2034, %v2057
        %v2071 = vadd.f32 %v2035, %v2057
        %v2072 = vadd.f32 %v2036, %v2057
        %v2073 = vadd.f32 %v2037, %v2057
        %v2074 = vadd.f32 %v2038, %v2057
        %v2075 = vadd.f32 %v2039, %v2057
        %v2076 = vadd.f32 %v2040, %v2057
        %v2077 = vadd.f32 %v2041, %v2057
        %v2078 = vadd.f32 %v2042, %v2057
        %v2079 = vadd.f32 %v2043, %v2057
        %v2080 = vadd.f32 %v2044, %v2057
        %v2081 = vadd.f32 %v2045, %v2057
        %v2082 = vadd.f32 %v2046, %v2057
        %v2083 = vadd.f32 %v2047, %v2057
        %v2084 = vadd.f32 %v2048, %v2057
        %v2085 = vadd.f32 %v2049, %v2057
        %v2086 = vadd.f32 %v2050, %v2057
        %v2087 = vadd.f32 %v2051, %v2057
        %v2088 = vadd.f32 %v2052, %v2057
        %v2089 = vadd.f32 %v2053, %v2057
        %v2090 = vadd.f32 %v2054, %v2057
        %v2091 = vmax.f32 %v2059, 0.0
        %v2092 = vmax.f32 %v2060, 0.0
        %v2093 = vmax.f32 %v2061, 0.0
        %v2094 = vmax.f32 %v2062, 0.0
        %v2095 = vmax.f32 %v2063, 0.0
        %v2096 = vmax.f32 %v2064, 0.0
        %v2097 = vmax.f32 %v2065, 0.0
        %v2098 = vmax.f32 %v2066, 0.0
        %v2099 = vmax.f32 %v2067, 0.0
        %v2100 = vmax.f32 %v2068, 0.0
        %v2101 = vmax.f32 %v2069, 0.0
        %v2102 = vmax.f32 %v2070, 0.0
        %v2103 = vmax.f32 %v2071, 0.0
        %v2104 = vmax.f32 %v2072, 0.0
        %v2105 = vmax.f32 %v2073, 0.0
        %v2106 = vmax.f32 %v2074, 0.0
        %v2107 = vmax.f32 %v2075, 0.0
        %v2108 = vmax.f32 %v2076, 0.0
        %v2109 = vmax.f32 %v2077, 0.0
        %v2110 = vmax.f32 %v2078, 0.0
        %v2111 = vmax.f32 %v2079, 0.0
        %v2112 = vmax.f32 %v2080, 0.0
        %v2113 = vmax.f32 %v2081, 0.0
        %v2114 = vmax.f32 %v2082, 0.0
        %v2115 = vmax.f32 %v2083, 0.0
        %v2116 = vmax.f32 %v2084, 0.0
        %v2117 = vmax.f32 %v2085, 0.0
        %v2118 = vmax.f32 %v2086, 0.0
        %v2119 = vmax.f32 %v2087, 0.0
        %v2120 = vmax.f32 %v2088, 0.0
        %v2121 = vmax.f32 %v2089, 0.0
        %v2122 = vmax.f32 %v2090, 0.0
        %v2123 = vpack.c.bf16 %v2092, %v2091
        %v2124 = vpack.c.bf16 %v2094, %v2093
        %v2125 = vpack.c.bf16 %v2096, %v2095
        %v2126 = vpack.c.bf16 %v2098, %v2097
        %v2127 = vpack.c.bf16 %v2100, %v2099
        %v2128 = vpack.c.bf16 %v2102, %v2101
        %v2129 = vpack.c.bf16 %v2104, %v2103
        %v2130 = vpack.c.bf16 %v2106, %v2105
        %v2131 = vpack.c.bf16 %v2108, %v2107
        %v2132 = vpack.c.bf16 %v2110, %v2109
        %v2133 = vpack.c.bf16 %v2112, %v2111
        %v2134 = vpack.c.bf16 %v2114, %v2113
        %v2135 = vpack.c.bf16 %v2116, %v2115
        %v2136 = vpack.c.bf16 %v2118, %v2117
        %v2137 = vpack.c.bf16 %v2120, %v2119
        %v2138 = vpack.c.bf16 %v2122, %v2121
        %v2139 = vld [vmem:[%s3] sm:$0xf]
        %v2140 = vld [vmem:[%s3 + $0x4] sm:$0xf]
        %v2141 = vld [vmem:[%s3 + $0x8] sm:$0xf]
        %v2142 = vld [vmem:[%s3 + $0xc] sm:$0xf]
        %v2143 = vld [vmem:[%s6] sm:$0x1]
        %v2145 = vperm.slane %v2143, 0
        %v2151 = vunpack.c.l.b16 %v2139
        %v2152 = vunpack.c.l.b16 %v2140
        %v2153 = vunpack.c.l.b16 %v2141
        %v2154 = vunpack.c.l.b16 %v2142
        %v2155 = vpack.c.b16 %v2152, %v2151
        %v2156 = vpack.c.b16 %v2154, %v2153
        %v2160 = vsel %vm940, %v2123, 0
        %v2163 = vsel %vm940, %v2124, 0
        %v2166 = vsel %vm940, %v2125, 0
        %v2169 = vsel %vm940, %v2126, 0
        %v2172 = vsel %vm940, %v2127, 0
        %v2175 = vsel %vm940, %v2128, 0
        %v2178 = vsel %vm940, %v2129, 0
        %v2181 = vsel %vm940, %v2130, 0
        %v2184 = vsel %vm940, %v2131, 0
        %v2187 = vsel %vm940, %v2132, 0
        %v2190 = vsel %vm940, %v2133, 0
        %v2193 = vsel %vm940, %v2134, 0
        %v2196 = vsel %vm940, %v2135, 0
        %v2199 = vsel %vm940, %v2136, 0
        %v2202 = vsel %vm940, %v2137, 0
        %v2205 = vsel %vm940, %v2138, 0
        %2207 = vmatpush.bf16.msra.mxu0 0
        %2208 = vmatpush.bf16.msra.mxu0 0
        %2209 = vmatpush.bf16.msra.mxu0 0
        %2210 = vmatpush.bf16.msra.mxu0 0
        %2211 = vmatpush.bf16.msra.mxu0 0
        %2212 = vmatpush.bf16.msra.mxu0 0
        %2213 = vmatpush.bf16.msra.mxu0 %v2156
        %2214 = vmatpush.bf16.msra.mxu0 %v2155
        %2215 = vmatmul.bf16.gmra.mxu0 %v2160
        %v2216 = vpop.f32.mrf.mxu0
        %v2217 = vadd.f32 %v2145, %v2216
        %v2218 = vpop.f32.mrf.mxu0
        %v2219 = vadd.f32 %v2145, %v2218
        %2220 = vmatmul.bf16.gmra.mxu0 %v2163
        %v2221 = vpop.f32.mrf.mxu0
        %v2222 = vadd.f32 %v2145, %v2221
        %v2223 = vpop.f32.mrf.mxu0
        %v2224 = vadd.f32 %v2145, %v2223
        %2225 = vmatmul.bf16.gmra.mxu0 %v2166
        %v2226 = vpop.f32.mrf.mxu0
        %v2227 = vadd.f32 %v2145, %v2226
        %v2228 = vpop.f32.mrf.mxu0
        %v2229 = vadd.f32 %v2145, %v2228
        %2230 = vmatmul.bf16.gmra.mxu0 %v2169
        %v2231 = vpop.f32.mrf.mxu0
        %v2232 = vadd.f32 %v2145, %v2231
        %v2233 = vpop.f32.mrf.mxu0
        %v2234 = vadd.f32 %v2145, %v2233
        %2235 = vmatmul.bf16.gmra.mxu0 %v2172
        %v2236 = vpop.f32.mrf.mxu0
        %v2237 = vadd.f32 %v2145, %v2236
        %v2238 = vpop.f32.mrf.mxu0
        %v2239 = vadd.f32 %v2145, %v2238
        %2240 = vmatmul.bf16.gmra.mxu0 %v2175
        %v2241 = vpop.f32.mrf.mxu0
        %v2242 = vadd.f32 %v2145, %v2241
        %v2243 = vpop.f32.mrf.mxu0
        %v2244 = vadd.f32 %v2145, %v2243
        %2245 = vmatmul.bf16.gmra.mxu0 %v2178
        %v2246 = vpop.f32.mrf.mxu0
        %v2247 = vadd.f32 %v2145, %v2246
        %v2248 = vpop.f32.mrf.mxu0
        %v2249 = vadd.f32 %v2145, %v2248
        %2250 = vmatmul.bf16.gmra.mxu0 %v2181
        %v2251 = vpop.f32.mrf.mxu0
        %v2252 = vadd.f32 %v2145, %v2251
        %v2253 = vpop.f32.mrf.mxu0
        %v2254 = vadd.f32 %v2145, %v2253
        %2255 = vmatmul.bf16.gmra.mxu0 %v2184
        %v2256 = vpop.f32.mrf.mxu0
        %v2257 = vadd.f32 %v2145, %v2256
        %v2258 = vpop.f32.mrf.mxu0
        %v2259 = vadd.f32 %v2145, %v2258
        %2260 = vmatmul.bf16.gmra.mxu0 %v2187
        %v2261 = vpop.f32.mrf.mxu0
        %v2262 = vadd.f32 %v2145, %v2261
        %v2263 = vpop.f32.mrf.mxu0
        %v2264 = vadd.f32 %v2145, %v2263
        %2265 = vmatmul.bf16.gmra.mxu0 %v2190
        %v2266 = vpop.f32.mrf.mxu0
        %v2267 = vadd.f32 %v2145, %v2266
        %v2268 = vpop.f32.mrf.mxu0
        %v2269 = vadd.f32 %v2145, %v2268
        %2270 = vmatmul.bf16.gmra.mxu0 %v2193
        %v2271 = vpop.f32.mrf.mxu0
        %v2272 = vadd.f32 %v2145, %v2271
        %v2273 = vpop.f32.mrf.mxu0
        %v2274 = vadd.f32 %v2145, %v2273
        %2275 = vmatmul.bf16.gmra.mxu0 %v2196
        %v2276 = vpop.f32.mrf.mxu0
        %v2277 = vadd.f32 %v2145, %v2276
        %v2278 = vpop.f32.mrf.mxu0
        %v2279 = vadd.f32 %v2145, %v2278
        %2280 = vmatmul.bf16.gmra.mxu0 %v2199
        %v2281 = vpop.f32.mrf.mxu0
        %v2282 = vadd.f32 %v2145, %v2281
        %v2283 = vpop.f32.mrf.mxu0
        %v2284 = vadd.f32 %v2145, %v2283
        %2285 = vmatmul.bf16.gmra.mxu0 %v2202
        %v2286 = vpop.f32.mrf.mxu0
        %v2287 = vadd.f32 %v2145, %v2286
        %v2288 = vpop.f32.mrf.mxu0
        %v2289 = vadd.f32 %v2145, %v2288
        %2290 = vmatmul.bf16.gmra.mxu0 %v2205
        %v2291 = vpop.f32.mrf.mxu0
        %v2292 = vadd.f32 %v2145, %v2291
        %v2293 = vpop.f32.mrf.mxu0
        %v2294 = vadd.f32 %v2145, %v2293
        %2295 = vdwg.mxu0
        %v2296 = vld [vmem:[%s267] sm:$0xff]
        %v2297 = vld [vmem:[%s267 + $0x8] sm:$0xff]
        %v2298 = vld [vmem:[%s267 + $0x10] sm:$0xff]
        %v2299 = vld [vmem:[%s267 + $0x18] sm:$0xff]
        %v2300 = vld [vmem:[%s267 + $0x20] sm:$0xff]
        %v2301 = vld [vmem:[%s267 + $0x28] sm:$0xff]
        %v2302 = vld [vmem:[%s267 + $0x30] sm:$0xff]
        %v2303 = vld [vmem:[%s267 + $0x38] sm:$0xff]
        %v2304 = vld [vmem:[%s267 + $0x40] sm:$0xff]
        %v2305 = vld [vmem:[%s267 + $0x48] sm:$0xff]
        %v2306 = vld [vmem:[%s267 + $0x50] sm:$0xff]
        %v2307 = vld [vmem:[%s267 + $0x58] sm:$0xff]
        %v2308 = vld [vmem:[%s267 + $0x60] sm:$0xff]
        %v2309 = vld [vmem:[%s267 + $0x68] sm:$0xff]
        %v2310 = vld [vmem:[%s267 + $0x70] sm:$0xff]
        %v2311 = vld [vmem:[%s267 + $0x78] sm:$0xff]
        %v2312 = vld [vmem:[%s267 + $0x80] sm:$0xff]
        %v2313 = vld [vmem:[%s267 + $0x88] sm:$0xff]
        %v2314 = vld [vmem:[%s267 + $0x90] sm:$0xff]
        %v2315 = vld [vmem:[%s267 + $0x98] sm:$0xff]
        %v2316 = vld [vmem:[%s267 + $0xa0] sm:$0xff]
        %v2317 = vld [vmem:[%s267 + $0xa8] sm:$0xff]
        %v2318 = vld [vmem:[%s267 + $0xb0] sm:$0xff]
        %v2319 = vld [vmem:[%s267 + $0xb8] sm:$0xff]
        %v2320 = vld [vmem:[%s267 + $0xc0] sm:$0xff]
        %v2321 = vld [vmem:[%s267 + $0xc8] sm:$0xff]
        %v2322 = vld [vmem:[%s267 + $0xd0] sm:$0xff]
        %v2323 = vld [vmem:[%s267 + $0xd8] sm:$0xff]
        %v2324 = vld [vmem:[%s267 + $0xe0] sm:$0xff]
        %v2325 = vld [vmem:[%s267 + $0xe8] sm:$0xff]
        %v2326 = vld [vmem:[%s267 + $0xf0] sm:$0xff]
        %v2327 = vld [vmem:[%s267 + $0xf8] sm:$0xff]
        %v2328 = vadd.f32 %v2217, %v2296
        %v2329 = vadd.f32 %v2219, %v2297
        %v2330 = vadd.f32 %v2222, %v2298
        %v2331 = vadd.f32 %v2224, %v2299
        %v2332 = vadd.f32 %v2227, %v2300
        %v2333 = vadd.f32 %v2229, %v2301
        %v2334 = vadd.f32 %v2232, %v2302
        %v2335 = vadd.f32 %v2234, %v2303
        %v2336 = vadd.f32 %v2237, %v2304
        %v2337 = vadd.f32 %v2239, %v2305
        %v2338 = vadd.f32 %v2242, %v2306
        %v2339 = vadd.f32 %v2244, %v2307
        %v2340 = vadd.f32 %v2247, %v2308
        %v2341 = vadd.f32 %v2249, %v2309
        %v2342 = vadd.f32 %v2252, %v2310
        %v2343 = vadd.f32 %v2254, %v2311
        %v2344 = vadd.f32 %v2257, %v2312
        %v2345 = vadd.f32 %v2259, %v2313
        %v2346 = vadd.f32 %v2262, %v2314
        %v2347 = vadd.f32 %v2264, %v2315
        %v2348 = vadd.f32 %v2267, %v2316
        %v2349 = vadd.f32 %v2269, %v2317
        %v2350 = vadd.f32 %v2272, %v2318
        %v2351 = vadd.f32 %v2274, %v2319
        %v2352 = vadd.f32 %v2277, %v2320
        %v2353 = vadd.f32 %v2279, %v2321
        %v2354 = vadd.f32 %v2282, %v2322
        %v2355 = vadd.f32 %v2284, %v2323
        %v2356 = vadd.f32 %v2287, %v2324
        %v2357 = vadd.f32 %v2289, %v2325
        %v2358 = vadd.f32 %v2292, %v2326
        %v2359 = vadd.f32 %v2294, %v2327
        %v2360 = vmax.f32 %v2328, 0.0
        %v2361 = vmax.f32 %v2329, 0.0
        %v2362 = vmax.f32 %v2330, 0.0
        %v2363 = vmax.f32 %v2331, 0.0
        %v2364 = vmax.f32 %v2332, 0.0
        %v2365 = vmax.f32 %v2333, 0.0
        %v2366 = vmax.f32 %v2334, 0.0
        %v2367 = vmax.f32 %v2335, 0.0
        %v2368 = vmax.f32 %v2336, 0.0
        %v2369 = vmax.f32 %v2337, 0.0
        %v2370 = vmax.f32 %v2338, 0.0
        %v2371 = vmax.f32 %v2339, 0.0
        %v2372 = vmax.f32 %v2340, 0.0
        %v2373 = vmax.f32 %v2341, 0.0
        %v2374 = vmax.f32 %v2342, 0.0
        %v2375 = vmax.f32 %v2343, 0.0
        %v2376 = vmax.f32 %v2344, 0.0
        %v2377 = vmax.f32 %v2345, 0.0
        %v2378 = vmax.f32 %v2346, 0.0
        %v2379 = vmax.f32 %v2347, 0.0
        %v2380 = vmax.f32 %v2348, 0.0
        %v2381 = vmax.f32 %v2349, 0.0
        %v2382 = vmax.f32 %v2350, 0.0
        %v2383 = vmax.f32 %v2351, 0.0
        %v2384 = vmax.f32 %v2352, 0.0
        %v2385 = vmax.f32 %v2353, 0.0
        %v2386 = vmax.f32 %v2354, 0.0
        %v2387 = vmax.f32 %v2355, 0.0
        %v2388 = vmax.f32 %v2356, 0.0
        %v2389 = vmax.f32 %v2357, 0.0
        %v2390 = vmax.f32 %v2358, 0.0
        %v2391 = vmax.f32 %v2359, 0.0
        %2392 = vst [vmem:[%s298] sm:$0xff] %v2360
        %2393 = vst [vmem:[%s298 + $0x8] sm:$0xff] %v2361
        %2394 = vst [vmem:[%s298 + $0x10] sm:$0xff] %v2362
        %2395 = vst [vmem:[%s298 + $0x18] sm:$0xff] %v2363
        %2396 = vst [vmem:[%s298 + $0x20] sm:$0xff] %v2364
        %2397 = vst [vmem:[%s298 + $0x28] sm:$0xff] %v2365
        %2398 = vst [vmem:[%s298 + $0x30] sm:$0xff] %v2366
        %2399 = vst [vmem:[%s298 + $0x38] sm:$0xff] %v2367
        %2400 = vst [vmem:[%s298 + $0x40] sm:$0xff] %v2368
        %2401 = vst [vmem:[%s298 + $0x48] sm:$0xff] %v2369
        %2402 = vst [vmem:[%s298 + $0x50] sm:$0xff] %v2370
        %2403 = vst [vmem:[%s298 + $0x58] sm:$0xff] %v2371
        %2404 = vst [vmem:[%s298 + $0x60] sm:$0xff] %v2372
        %2405 = vst [vmem:[%s298 + $0x68] sm:$0xff] %v2373
        %2406 = vst [vmem:[%s298 + $0x70] sm:$0xff] %v2374
        %2407 = vst [vmem:[%s298 + $0x78] sm:$0xff] %v2375
        %2408 = vst [vmem:[%s298 + $0x80] sm:$0xff] %v2376
        %2409 = vst [vmem:[%s298 + $0x88] sm:$0xff] %v2377
        %2410 = vst [vmem:[%s298 + $0x90] sm:$0xff] %v2378
        %2411 = vst [vmem:[%s298 + $0x98] sm:$0xff] %v2379
        %2412 = vst [vmem:[%s298 + $0xa0] sm:$0xff] %v2380
        %2413 = vst [vmem:[%s298 + $0xa8] sm:$0xff] %v2381
        %2414 = vst [vmem:[%s298 + $0xb0] sm:$0xff] %v2382
        %2415 = vst [vmem:[%s298 + $0xb8] sm:$0xff] %v2383
        %2416 = vst [vmem:[%s298 + $0xc0] sm:$0xff] %v2384
        %2417 = vst [vmem:[%s298 + $0xc8] sm:$0xff] %v2385
        %2418 = vst [vmem:[%s298 + $0xd0] sm:$0xff] %v2386
        %2419 = vst [vmem:[%s298 + $0xd8] sm:$0xff] %v2387
        %2420 = vst [vmem:[%s298 + $0xe0] sm:$0xff] %v2388
        %2421 = vst [vmem:[%s298 + $0xe8] sm:$0xff] %v2389
        %2422 = vst [vmem:[%s298 + $0xf0] sm:$0xff] %v2390
        %2423 = vst [vmem:[%s298 + $0xf8] sm:$0xff] %v2391
        %s2424 = sand.u32 %s184, 1
        %s2425 = scalar_lea.sflag [#allocation5], %s2424
        %s2426 = sand.u32 %s184, 1
        %s2427 = smul.addr %s2426, 256
        %s2428 = scalar_lea.vmem [#allocation6], %s2427
        // Predicated region
        $region53: #{tpu_custom_call.1} parent=47 // pred_check
          %p2429 = pneg %p194
        $region54: #{tpu_custom_call.1} parent=47 // pred_check_branch
          %2431 = sbr.rel (%p2429) target = $region56
        $region55: #{tpu_custom_call.1} parent=47 // pred_region
          %2433 = vsyncadd %s2425, 0
          %s2434 = smul.addr %s24, 32
          %s2435 = smul.addr %s2434, 8
          %s2436 = scalar_lea.hbm %s7, %s2435
          %s2437 = sshll.u32 %s2428, 4
          %s2438 = int_to_ptr.vmem [resolvable:$true] %s2437
          %s2439 = sshll.u32 %s2436, 4
          %s2440 = int_to_ptr.hbm [resolvable:$true] %s2439
          %2445 = dma.vmem_to_hbm [thread:$0]  %s2438, 4096, %s2440, %s2425, 128, 128, 8
        $region56: #{tpu_custom_call.1} parent=47 // pred_fallthru
          _
      $region48: #{tpu_custom_call.1} parent=5 // pred_fallthru
        _
      %p2446 = scmp.le.s32.totalorder 2, %s19
      // Predicated region
      $region57: #{tpu_custom_call.1} parent=5 // pred_check
        %p2447 = pneg %p2446
      $region58: #{tpu_custom_call.1} parent=5 // pred_check_branch
        %2449 = sbr.rel (%p2447) target = $region60
      $region59: #{tpu_custom_call.1} parent=5 // pred_region
        %s2450 = ssub.s32 %s19, 2
        // Predicated region
        $region61: #{tpu_custom_call.1} parent=59 // pred_check
          %p2451 = pneg %p200
        $region62: #{tpu_custom_call.1} parent=59 // pred_check_branch
          %2453 = sbr.rel (%p2451) target = $region64
        $region63: #{tpu_custom_call.1} parent=59 // pred_region
          %s2454 = sand.u32 %s185, 1
          %s2455 = scalar_lea.sflag [#allocation5], %s2454
          %s2456 = sand.u32 %s185, 1
          %s2457 = smul.addr %s2456, 256
          %s2458 = scalar_lea.vmem [#allocation6], %s2457
          %2460 = dma.done %s2455, 4096
        $region64: #{tpu_custom_call.1} parent=59 // pred_fallthru
          _
      $region60: #{tpu_custom_call.1} parent=5 // pred_fallthru
        _
    $region6: #{tpu_custom_call.1} parent=1 // loop_footer
      %s23 = sadd.s32 1, %s19
    $region7: #{tpu_custom_call.1} parent=1 // loop_footer_branch
      %18 = sbr.rel target = $region3
    $region8: #{tpu_custom_call.1} parent=1 // loop_exit
      _
    %2461 = vsyncpa [#allocation4], 1
    %s2462 = scalar_lea.sflag [#allocation4], 1
    %2463 = vsyncpa %s2462, 1
    %2464 = vsyncpa [#allocation5], 1
    %s2465 = scalar_lea.sflag [#allocation5], 1
    %2466 = vsyncpa %s2465, 1

</llo_original>
